<compile_context>
chip_gen: v6e
topology: v6e:2x2x1
jax: 0.10.0
libtpu: 0.0.40
codegen_flags: <defaults>
</compile_context>

<pallas_src>
import functools
import math

import numpy as np
import jax
import jax.numpy as jnp
from jax import lax
from jax.experimental import pallas as pl
from jax.experimental.pallas import tpu as pltpu

POS_DIM = 32
HIDDEN = 32
BN_EPS = 1e-5
PAD = 128     # lane zero-padding around the batch-collapsed pixel axis
KPAD = 64     # padded contraction length for the fused conv matmul


# ----------------------------- Pallas kernel --------------------------------
def _taa_kernel(xpad_ref, xa_ref, valid_ref, w_ref, pcol_ref, w1_ref,
                out_ref, p_ref, *, B, C, H, W):
    # xpad_ref : (C, PAD + B*HW + PAD)  channel-major x, batch on lanes, zero-padded
    # xa_ref   : (B*C, HW)              x for the final apply (dense 8-sublane rows)
    # valid_ref: (9, HW)                static 3x3 border-validity mask per tap
    # w_ref    : (32, KPAD)             [x-tap weights | per-(batch,tap) temb weights | 0]
    # pcol_ref : (32, 4)                columns [gamma, beta, b1, 0]
    # w1_ref   : (8, 32)                row 0 = 1x1-conv weights, rows 1..7 = 0
    # out_ref  : (B*C, HW)
    # p_ref    : (KPAD, B*HW)           VMEM scratch: fused im2col / mask operand
    HW = H * W
    NL = B * HW
    NTAP = 9
    used = NTAP * C + B * NTAP

    # ---- build the fused im2col / temb-mask matmul operand in VMEM ----------
    valid = valid_ref[...]                                     # (9, HW)
    validt = jnp.concatenate([valid] * B, axis=1)              # (9, NL)

    for k in range(NTAP):                                      # static: 9 taps
        dy, dx = k // 3, k % 3
        s = (dy - 1) * W + (dx - 1)
        win = xpad_ref[:, PAD + s: PAD + s + NL]               # shifted window (C, NL)
        p_ref[k * C:(k + 1) * C, :] = win * validt[k:k + 1, :]

    lane = lax.broadcasted_iota(jnp.int32, (NTAP, NL), 1)
    for b in range(B):                                         # block-diag temb mask rows
        bsel = ((lane >= b * HW) & (lane < (b + 1) * HW)).astype(jnp.float32)
        r0 = NTAP * C + b * NTAP
        p_ref[r0:r0 + NTAP, :] = validt * bsel

    if used < p_ref.shape[0]:                                  # zero the padded K rows
        p_ref[used:, :] = jnp.zeros((p_ref.shape[0] - used, NL), jnp.float32)

    # ---- 3x3 conv + timestep bias as ONE matmul: (32, KPAD) @ (KPAD, NL) ----
    acc = jnp.dot(w_ref[...], p_ref[...],
                  preferred_element_type=jnp.float32)          # (32, NL)

    # ---- BatchNorm (train mode, biased var) fused scale/shift + ReLU --------
    inv_n = 1.0 / NL
    mean = jnp.sum(acc, axis=1, keepdims=True) * inv_n         # (32, 1)
    ex2 = jnp.sum(acc * acc, axis=1, keepdims=True) * inv_n    # (32, 1)
    var = ex2 - mean * mean
    scale = pcol_ref[:, 0:1] * lax.rsqrt(var + BN_EPS)         # gamma * rsqrt(var+eps)
    shift = pcol_ref[:, 1:2] - mean * scale                    # beta - mean*scale
    hid = jnp.maximum(acc * scale + shift, 0.0)                # (32, NL)

    # ---- 1x1 conv as a matmul, + bias, sigmoid ------------------------------
    logit = jnp.dot(w1_ref[...], hid,
                    preferred_element_type=jnp.float32)        # (8, NL); row 0 is real
    b1 = pcol_ref[0:1, 2:3]                                    # (1, 1)
    att = jax.nn.sigmoid(logit[0:1, :] + b1)                   # (1, NL)

    # ---- attention * x with a dense (B*C, HW) store --------------------------
    att_rows = jnp.concatenate(
        [att[:, b * HW:(b + 1) * HW] for b in range(B) for _ in range(C)],
        axis=0)                                                # (B*C, HW)
    out_ref[...] = (att_rows * xa_ref[...].astype(jnp.float32)).astype(out_ref.dtype)


def _full_spec(shape):
    n = len(shape)
    return pl.BlockSpec(shape, lambda i, _n=n: (0,) * _n)


# ------------------------------- wrapper -------------------------------------
@jax.jit
def timestep_aware_attention(x_nchw, t, params):
    """x_nchw: (B, C, H, W) float32, t: (B, 1) float32. Returns (B, C, H, W)."""
    w3, b3, gamma, beta, w1, b1 = params
    del b3  # per-channel constant: cancelled exactly by train-mode BatchNorm
    B, C, H, W = x_nchw.shape
    HW = H * W
    NL = B * HW

    # Sinusoidal timestep embedding (B, POS_DIM).
    half = POS_DIM // 2
    exp_term = jnp.exp(-math.log(10000.0) *
                       jnp.arange(half, dtype=jnp.float32) / half)
    emb = jnp.concatenate([jnp.sin(t * exp_term), jnp.cos(t * exp_term)],
                          axis=-1)                                     # (B, 32)

    # Channel-major x with batch collapsed onto the lane axis, zero-padded so the
    # kernel can take the 9 conv taps as statically shifted window loads.
    x_cb = jnp.transpose(x_nchw.reshape(B, C, HW), (1, 0, 2)).reshape(C, NL)
    x_pad = jnp.pad(x_cb, ((0, 0), (PAD, PAD)))                        # (C, NL+2*PAD)

    # Row-dense view for the final attention apply / store.
    x_a = x_nchw.reshape(B * C, HW)                                    # (B*C, HW)

    # Fused conv weights: [x-channel taps | per-(batch,tap) temb weights | zeros].
    w3x = jnp.transpose(w3[:, :C], (0, 2, 3, 1)).reshape(HIDDEN, 9 * C)    # (32, 9C)
    wt = w3[:, C:].reshape(HIDDEN, POS_DIM, 9)                             # (32, 32, 9)
    b_tap = jnp.einsum('bj,ojk->obk', emb, wt).reshape(HIDDEN, B * 9)      # (32, B*9)
    wcomb = jnp.zeros((HIDDEN, KPAD), jnp.float32)
    wcomb = wcomb.at[:, :9 * C].set(w3x)
    wcomb = wcomb.at[:, 9 * C:9 * C + B * 9].set(b_tap)                    # (32, KPAD)

    # Static per-tap border-validity mask (9, HW) for the zero-padded 3x3 conv.
    def edge_valid(n):
        pos = jnp.arange(n)[:, None] + jnp.arange(3)[None, :] - 1
        return ((pos >= 0) & (pos < n)).astype(jnp.float32)            # (n, 3)

    vh, vw = edge_valid(H), edge_valid(W)
    valid = jnp.transpose(vh[:, None, :, None] * vw[None, :, None, :],
                          (2, 3, 0, 1)).reshape(9, HW)                 # (9, HW)

    # Small per-channel params: columns [gamma, beta, b1, 0]; 1x1 weights padded
    # to 8 rows so the 1x1 conv is a plain MXU matmul.
    pcol = jnp.stack([gamma, beta,
                      jnp.broadcast_to(b1.reshape(1), (HIDDEN,)),
                      jnp.zeros((HIDDEN,), jnp.float32)], axis=1)      # (32, 4)
    w1m = jnp.zeros((8, HIDDEN), jnp.float32).at[0].set(w1.reshape(HIDDEN))

    kernel = functools.partial(_taa_kernel, B=B, C=C, H=H, W=W)
    out_flat = pl.pallas_call(
        kernel,
        out_shape=jax.ShapeDtypeStruct((B * C, HW), x_nchw.dtype),
        grid=(1,),
        in_specs=[
            _full_spec(x_pad.shape),
            _full_spec(x_a.shape),
            _full_spec(valid.shape),
            _full_spec(wcomb.shape),
            _full_spec(pcol.shape),
            _full_spec(w1m.shape),
        ],
        out_specs=_full_spec((B * C, HW)),
        scratch_shapes=[pltpu.VMEM((KPAD, NL), jnp.float32)],
        compiler_params=pltpu.CompilerParams(
            dimension_semantics=("arbitrary",)),
    )(x_pad, x_a, valid, wcomb, pcol, w1m)

    return out_flat.reshape(B, C, H, W)                               # NCHW


# --------------------------- pure-JAX reference -------------------------------
def reference_forward(x_nchw, t, params):
    w3, b3, gamma, beta, w1, b1 = params
    B, C, H, W = x_nchw.shape
    half = POS_DIM // 2
    exp_term = jnp.exp(-math.log(10000.0) *
                       jnp.arange(half, dtype=jnp.float32) / half)
    emb = jnp.concatenate([jnp.sin(t * exp_term), jnp.cos(t * exp_term)], axis=-1)
    t_emb = jnp.broadcast_to(emb[:, :, None, None], (B, POS_DIM, H, W))
    concat = jnp.concatenate([x_nchw, t_emb], axis=1)
    conv = lax.conv_general_dilated(
        concat, w3, window_strides=(1, 1), padding="SAME",
        dimension_numbers=("NCHW", "OIHW", "NCHW")) + b3[None, :, None, None]
    mean = jnp.mean(conv, axis=(0, 2, 3), keepdims=True)
    var = jnp.var(conv, axis=(0, 2, 3), keepdims=True)
    bn = gamma[None, :, None, None] * (conv - mean) * lax.rsqrt(var + BN_EPS) \
        + beta[None, :, None, None]
    relu = jnp.maximum(bn, 0.0)
    logit = lax.conv_general_dilated(
        relu, w1, window_strides=(1, 1), padding="SAME",
        dimension_numbers=("NCHW", "OIHW", "NCHW")) + b1[None, :, None, None]
    att = jax.nn.sigmoid(logit)
    return att * x_nchw


# ---------------------------------- main --------------------------------------
if __name__ == "__main__":
    B, C, H, W = 2, 4, 16, 16
    Cin = C + POS_DIM

    key = jax.random.PRNGKey(0)
    kx, kt, k1, k2, k3, k4, k5, k6 = jax.random.split(key, 8)

    x = jax.random.normal(kx, (B, C, H, W), jnp.float32)
    t = jax.random.uniform(kt, (B, 1), jnp.float32, 0.0, 100.0)

    # Deterministic synthetic parameters (not loaded from a checkpoint).
    w3 = 0.05 * jax.random.normal(k1, (HIDDEN, Cin, 3, 3), jnp.float32)   # OIHW
    b3 = 0.05 * jax.random.normal(k2, (HIDDEN,), jnp.float32)
    gamma = 1.0 + 0.1 * jax.random.normal(k3, (HIDDEN,), jnp.float32)
    beta = 0.1 * jax.random.normal(k4, (HIDDEN,), jnp.float32)
    w1 = 0.1 * jax.random.normal(k5, (1, HIDDEN, 1, 1), jnp.float32)      # OIHW
    b1 = 0.1 * jax.random.normal(k6, (1,), jnp.float32)
    params = (w3, b3, gamma, beta, w1, b1)

    out = timestep_aware_attention(x, t, params)
    out = jax.block_until_ready(out)

    ref = jax.block_until_ready(reference_forward(x, t, params))
    np.testing.assert_allclose(np.asarray(out), np.asarray(ref),
                               rtol=2e-4, atol=2e-4)

    print("KERNEL_OK")
</pallas_src>

<mosaic_0001>
module attributes {stable_mosaic.version = 11 : i64} {
  func.func @_taa_kernel(%arg0: i32, %arg1: memref<4x768xf32, #tpu.memory_space<vmem>>, %arg2: memref<8x256xf32, #tpu.memory_space<vmem>>, %arg3: memref<9x256xf32, #tpu.memory_space<vmem>>, %arg4: memref<32x64xf32, #tpu.memory_space<vmem>>, %arg5: memref<32x4xf32, #tpu.memory_space<vmem>>, %arg6: memref<8x32xf32, #tpu.memory_space<vmem>>, %arg7: memref<8x256xf32, #tpu.memory_space<vmem>>, %arg8: memref<64x512xf32, #tpu.memory_space<vmem>>) attributes {dimension_semantics = [#tpu.dimension_semantics<arbitrary>], iteration_bounds = array<i64: 1>, scalar_prefetch = 0 : i64, scratch_operands = 1 : i64, tpu.core_type = #tpu.core_type<tc>, window_params = [{pipeline_mode = #tpu.pipeline_mode<synchronous>, transform_indices = @transform_0, window_bounds = array<i64: 4, 768>}, {pipeline_mode = #tpu.pipeline_mode<synchronous>, transform_indices = @transform_1, window_bounds = array<i64: 8, 256>}, {pipeline_mode = #tpu.pipeline_mode<synchronous>, transform_indices = @transform_2, window_bounds = array<i64: 9, 256>}, {pipeline_mode = #tpu.pipeline_mode<synchronous>, transform_indices = @transform_3, window_bounds = array<i64: 32, 64>}, {pipeline_mode = #tpu.pipeline_mode<synchronous>, transform_indices = @transform_4, window_bounds = array<i64: 32, 4>}, {pipeline_mode = #tpu.pipeline_mode<synchronous>, transform_indices = @transform_5, window_bounds = array<i64: 8, 32>}, {pipeline_mode = #tpu.pipeline_mode<synchronous>, transform_indices = @transform_6, window_bounds = array<i64: 8, 256>}]} {
    %c0 = arith.constant 0 : index
    %c0_0 = arith.constant 0 : index
    %0 = vector.load %arg3[%c0, %c0_0] : memref<9x256xf32, #tpu.memory_space<vmem>>, vector<9x256xf32>
    %1 = tpu.concatenate %0, %0 in 1 : vector<9x256xf32>, vector<9x256xf32> -> vector<9x512xf32>
    %c0_1 = arith.constant 0 : index
    %c111 = arith.constant 111 : index
    %2 = vector.load %arg1[%c0_1, %c111] : memref<4x768xf32, #tpu.memory_space<vmem>>, vector<4x512xf32>
    %3 = vector.extract_strided_slice %1 {offsets = [0, 0], sizes = [1, 512], strides = [1, 1]} : vector<9x512xf32> to vector<1x512xf32>
    %4 = vector.broadcast %3 : vector<1x512xf32> to vector<4x512xf32>
    %5 = arith.mulf %2, %4 : vector<4x512xf32>
    %c0_2 = arith.constant 0 : index
    %c0_3 = arith.constant 0 : index
    %6 = vector.load %arg8[%c0_2, %c0_3] : memref<64x512xf32, #tpu.memory_space<vmem>>, vector<4x512xf32>
    tpu.vector_store %arg8[%c0_2, %c0_3], %5 {strides = array<i32>} : memref<64x512xf32, #tpu.memory_space<vmem>>, vector<4x512xf32>,
    %c0_4 = arith.constant 0 : index
    %c112 = arith.constant 112 : index
    %7 = vector.load %arg1[%c0_4, %c112] : memref<4x768xf32, #tpu.memory_space<vmem>>, vector<4x512xf32>
    %8 = vector.extract_strided_slice %1 {offsets = [1, 0], sizes = [1, 512], strides = [1, 1]} : vector<9x512xf32> to vector<1x512xf32>
    %9 = vector.broadcast %8 : vector<1x512xf32> to vector<4x512xf32>
    %10 = arith.mulf %7, %9 : vector<4x512xf32>
    %c4 = arith.constant 4 : index
    %c0_5 = arith.constant 0 : index
    %11 = vector.load %arg8[%c4, %c0_5] : memref<64x512xf32, #tpu.memory_space<vmem>>, vector<4x512xf32>
    tpu.vector_store %arg8[%c4, %c0_5], %10 {strides = array<i32>} : memref<64x512xf32, #tpu.memory_space<vmem>>, vector<4x512xf32>,
    %c0_6 = arith.constant 0 : index
    %c113 = arith.constant 113 : index
    %12 = vector.load %arg1[%c0_6, %c113] : memref<4x768xf32, #tpu.memory_space<vmem>>, vector<4x512xf32>
    %13 = vector.extract_strided_slice %1 {offsets = [2, 0], sizes = [1, 512], strides = [1, 1]} : vector<9x512xf32> to vector<1x512xf32>
    %14 = vector.broadcast %13 : vector<1x512xf32> to vector<4x512xf32>
    %15 = arith.mulf %12, %14 : vector<4x512xf32>
    %c8 = arith.constant 8 : index
    %c0_7 = arith.constant 0 : index
    %16 = vector.load %arg8[%c8, %c0_7] : memref<64x512xf32, #tpu.memory_space<vmem>>, vector<4x512xf32>
    tpu.vector_store %arg8[%c8, %c0_7], %15 {strides = array<i32>} : memref<64x512xf32, #tpu.memory_space<vmem>>, vector<4x512xf32>,
    %c0_8 = arith.constant 0 : index
    %c127 = arith.constant 127 : index
    %17 = vector.load %arg1[%c0_8, %c127] : memref<4x768xf32, #tpu.memory_space<vmem>>, vector<4x512xf32>
    %18 = vector.extract_strided_slice %1 {offsets = [3, 0], sizes = [1, 512], strides = [1, 1]} : vector<9x512xf32> to vector<1x512xf32>
    %19 = vector.broadcast %18 : vector<1x512xf32> to vector<4x512xf32>
    %20 = arith.mulf %17, %19 : vector<4x512xf32>
    %c12 = arith.constant 12 : index
    %c0_9 = arith.constant 0 : index
    %21 = vector.load %arg8[%c12, %c0_9] : memref<64x512xf32, #tpu.memory_space<vmem>>, vector<4x512xf32>
    tpu.vector_store %arg8[%c12, %c0_9], %20 {strides = array<i32>} : memref<64x512xf32, #tpu.memory_space<vmem>>, vector<4x512xf32>,
    %c0_10 = arith.constant 0 : index
    %c128 = arith.constant 128 : index
    %22 = vector.load %arg1[%c0_10, %c128] : memref<4x768xf32, #tpu.memory_space<vmem>>, vector<4x512xf32>
    %23 = vector.extract_strided_slice %1 {offsets = [4, 0], sizes = [1, 512], strides = [1, 1]} : vector<9x512xf32> to vector<1x512xf32>
    %24 = vector.broadcast %23 : vector<1x512xf32> to vector<4x512xf32>
    %25 = arith.mulf %22, %24 : vector<4x512xf32>
    %c16 = arith.constant 16 : index
    %c0_11 = arith.constant 0 : index
    %26 = vector.load %arg8[%c16, %c0_11] : memref<64x512xf32, #tpu.memory_space<vmem>>, vector<4x512xf32>
    tpu.vector_store %arg8[%c16, %c0_11], %25 {strides = array<i32>} : memref<64x512xf32, #tpu.memory_space<vmem>>, vector<4x512xf32>,
    %c0_12 = arith.constant 0 : index
    %c129 = arith.constant 129 : index
    %27 = vector.load %arg1[%c0_12, %c129] : memref<4x768xf32, #tpu.memory_space<vmem>>, vector<4x512xf32>
    %28 = vector.extract_strided_slice %1 {offsets = [5, 0], sizes = [1, 512], strides = [1, 1]} : vector<9x512xf32> to vector<1x512xf32>
    %29 = vector.broadcast %28 : vector<1x512xf32> to vector<4x512xf32>
    %30 = arith.mulf %27, %29 : vector<4x512xf32>
    %c20 = arith.constant 20 : index
    %c0_13 = arith.constant 0 : index
    %31 = vector.load %arg8[%c20, %c0_13] : memref<64x512xf32, #tpu.memory_space<vmem>>, vector<4x512xf32>
    tpu.vector_store %arg8[%c20, %c0_13], %30 {strides = array<i32>} : memref<64x512xf32, #tpu.memory_space<vmem>>, vector<4x512xf32>,
    %c0_14 = arith.constant 0 : index
    %c143 = arith.constant 143 : index
    %32 = vector.load %arg1[%c0_14, %c143] : memref<4x768xf32, #tpu.memory_space<vmem>>, vector<4x512xf32>
    %33 = vector.extract_strided_slice %1 {offsets = [6, 0], sizes = [1, 512], strides = [1, 1]} : vector<9x512xf32> to vector<1x512xf32>
    %34 = vector.broadcast %33 : vector<1x512xf32> to vector<4x512xf32>
    %35 = arith.mulf %32, %34 : vector<4x512xf32>
    %c24 = arith.constant 24 : index
    %c0_15 = arith.constant 0 : index
    %36 = vector.load %arg8[%c24, %c0_15] : memref<64x512xf32, #tpu.memory_space<vmem>>, vector<4x512xf32>
    tpu.vector_store %arg8[%c24, %c0_15], %35 {strides = array<i32>} : memref<64x512xf32, #tpu.memory_space<vmem>>, vector<4x512xf32>,
    %c0_16 = arith.constant 0 : index
    %c144 = arith.constant 144 : index
    %37 = vector.load %arg1[%c0_16, %c144] : memref<4x768xf32, #tpu.memory_space<vmem>>, vector<4x512xf32>
    %38 = vector.extract_strided_slice %1 {offsets = [7, 0], sizes = [1, 512], strides = [1, 1]} : vector<9x512xf32> to vector<1x512xf32>
    %39 = vector.broadcast %38 : vector<1x512xf32> to vector<4x512xf32>
    %40 = arith.mulf %37, %39 : vector<4x512xf32>
    %c28 = arith.constant 28 : index
    %c0_17 = arith.constant 0 : index
    %41 = vector.load %arg8[%c28, %c0_17] : memref<64x512xf32, #tpu.memory_space<vmem>>, vector<4x512xf32>
    tpu.vector_store %arg8[%c28, %c0_17], %40 {strides = array<i32>} : memref<64x512xf32, #tpu.memory_space<vmem>>, vector<4x512xf32>,
    %c0_18 = arith.constant 0 : index
    %c145 = arith.constant 145 : index
    %42 = vector.load %arg1[%c0_18, %c145] : memref<4x768xf32, #tpu.memory_space<vmem>>, vector<4x512xf32>
    %43 = vector.extract_strided_slice %1 {offsets = [8, 0], sizes = [1, 512], strides = [1, 1]} : vector<9x512xf32> to vector<1x512xf32>
    %44 = vector.broadcast %43 : vector<1x512xf32> to vector<4x512xf32>
    %45 = arith.mulf %42, %44 : vector<4x512xf32>
    %c32 = arith.constant 32 : index
    %c0_19 = arith.constant 0 : index
    %46 = vector.load %arg8[%c32, %c0_19] : memref<64x512xf32, #tpu.memory_space<vmem>>, vector<4x512xf32>
    tpu.vector_store %arg8[%c32, %c0_19], %45 {strides = array<i32>} : memref<64x512xf32, #tpu.memory_space<vmem>>, vector<4x512xf32>,
    %47 = tpu.iota {dimensions = array<i32: 1>} : vector<9x512xi32>
    %c0_i32 = arith.constant 0 : i32
    %48 = vector.broadcast %c0_i32 : i32 to vector<9x512xi32>
    %49 = arith.cmpi sge, %47, %48 : vector<9x512xi32>
    %c256_i32 = arith.constant 256 : i32
    %50 = vector.broadcast %c256_i32 : i32 to vector<9x512xi32>
    %51 = arith.cmpi slt, %47, %50 : vector<9x512xi32>
    %52 = arith.andi %49, %51 : vector<9x512xi1>
    %53 = arith.extui %52 : vector<9x512xi1> to vector<9x512xi32>
    %54 = arith.sitofp %53 : vector<9x512xi32> to vector<9x512xf32>
    %55 = arith.mulf %1, %54 : vector<9x512xf32>
    %c36 = arith.constant 36 : index
    %c0_20 = arith.constant 0 : index
    %56 = vector.load %arg8[%c36, %c0_20] : memref<64x512xf32, #tpu.memory_space<vmem>>, vector<9x512xf32>
    tpu.vector_store %arg8[%c36, %c0_20], %55 {strides = array<i32>} : memref<64x512xf32, #tpu.memory_space<vmem>>, vector<9x512xf32>,
    %c256_i32_21 = arith.constant 256 : i32
    %57 = vector.broadcast %c256_i32_21 : i32 to vector<9x512xi32>
    %58 = arith.cmpi sge, %47, %57 : vector<9x512xi32>
    %c512_i32 = arith.constant 512 : i32
    %59 = vector.broadcast %c512_i32 : i32 to vector<9x512xi32>
    %60 = arith.cmpi slt, %47, %59 : vector<9x512xi32>
    %61 = arith.andi %58, %60 : vector<9x512xi1>
    %62 = arith.extui %61 : vector<9x512xi1> to vector<9x512xi32>
    %63 = arith.sitofp %62 : vector<9x512xi32> to vector<9x512xf32>
    %64 = arith.mulf %1, %63 : vector<9x512xf32>
    %c45 = arith.constant 45 : index
    %c0_22 = arith.constant 0 : index
    %65 = vector.load %arg8[%c45, %c0_22] : memref<64x512xf32, #tpu.memory_space<vmem>>, vector<9x512xf32>
    tpu.vector_store %arg8[%c45, %c0_22], %64 {strides = array<i32>} : memref<64x512xf32, #tpu.memory_space<vmem>>, vector<9x512xf32>,
    %cst = arith.constant 0.000000e+00 : f32
    %66 = vector.broadcast %cst : f32 to vector<10x512xf32>
    %c54 = arith.constant 54 : index
    %c0_23 = arith.constant 0 : index
    %67 = vector.load %arg8[%c54, %c0_23] : memref<64x512xf32, #tpu.memory_space<vmem>>, vector<10x512xf32>
    tpu.vector_store %arg8[%c54, %c0_23], %66 {strides = array<i32>} : memref<64x512xf32, #tpu.memory_space<vmem>>, vector<10x512xf32>,
    %c0_24 = arith.constant 0 : index
    %c0_25 = arith.constant 0 : index
    %68 = vector.load %arg4[%c0_24, %c0_25] : memref<32x64xf32, #tpu.memory_space<vmem>>, vector<32x64xf32>
    %c0_26 = arith.constant 0 : index
    %c0_27 = arith.constant 0 : index
    %69 = vector.load %arg8[%c0_26, %c0_27] : memref<64x512xf32, #tpu.memory_space<vmem>>, vector<64x512xf32>
    %cst_28 = arith.constant dense<0.000000e+00> : vector<32x512xf32>
    %70 = tpu.matmul %68, %69, %cst_28 {dimension_numbers = #tpu.dot_dimension_numbers<[1], [0], [0], [1], [0, 0, 1, 1], [], []>} : vector<32x64xf32>, vector<64x512xf32>, vector<32x512xf32> -> vector<32x512xf32>
    %cst_29 = arith.constant dense<0.000000e+00> : vector<32xf32>
    %71 = vector.multi_reduction <add>, %70, %cst_29 [1] : vector<32x512xf32> to vector<32xf32>
    %72 = vector.shape_cast %71 : vector<32xf32> to vector<32x1xf32>
    %cst_30 = arith.constant 0.001953125 : f32
    %73 = vector.broadcast %cst_30 : f32 to vector<32x1xf32>
    %74 = arith.mulf %72, %73 : vector<32x1xf32>
    %75 = arith.mulf %70, %70 : vector<32x512xf32>
    %cst_31 = arith.constant dense<0.000000e+00> : vector<32xf32>
    %76 = vector.multi_reduction <add>, %75, %cst_31 [1] : vector<32x512xf32> to vector<32xf32>
    %77 = vector.shape_cast %76 : vector<32xf32> to vector<32x1xf32>
    %cst_32 = arith.constant 0.001953125 : f32
    %78 = vector.broadcast %cst_32 : f32 to vector<32x1xf32>
    %79 = arith.mulf %77, %78 : vector<32x1xf32>
    %80 = arith.mulf %74, %74 : vector<32x1xf32>
    %81 = arith.subf %79, %80 : vector<32x1xf32>
    %c0_33 = arith.constant 0 : index
    %c0_34 = arith.constant 0 : index
    %82 = vector.load %arg5[%c0_33, %c0_34] : memref<32x4xf32, #tpu.memory_space<vmem>>, vector<32x1xf32>
    %cst_35 = arith.constant 9.99999974E-6 : f32
    %83 = vector.broadcast %cst_35 : f32 to vector<32x1xf32>
    %84 = arith.addf %81, %83 : vector<32x1xf32>
    %85 = math.rsqrt %84 : vector<32x1xf32>
    %86 = arith.mulf %82, %85 : vector<32x1xf32>
    %c0_36 = arith.constant 0 : index
    %c1 = arith.constant 1 : index
    %87 = vector.load %arg5[%c0_36, %c1] : memref<32x4xf32, #tpu.memory_space<vmem>>, vector<32x1xf32>
    %88 = arith.mulf %74, %86 : vector<32x1xf32>
    %89 = arith.subf %87, %88 : vector<32x1xf32>
    %90 = vector.broadcast %86 : vector<32x1xf32> to vector<32x512xf32>
    %91 = arith.mulf %70, %90 : vector<32x512xf32>
    %92 = vector.broadcast %89 : vector<32x1xf32> to vector<32x512xf32>
    %93 = arith.addf %91, %92 : vector<32x512xf32>
    %cst_37 = arith.constant 0.000000e+00 : f32
    %94 = vector.broadcast %cst_37 : f32 to vector<32x512xf32>
    %95 = arith.maximumf %93, %94 : vector<32x512xf32>
    %c0_38 = arith.constant 0 : index
    %c0_39 = arith.constant 0 : index
    %96 = vector.load %arg6[%c0_38, %c0_39] : memref<8x32xf32, #tpu.memory_space<vmem>>, vector<8x32xf32>
    %cst_40 = arith.constant dense<0.000000e+00> : vector<8x512xf32>
    %97 = tpu.matmul %96, %95, %cst_40 {dimension_numbers = #tpu.dot_dimension_numbers<[1], [0], [0], [1], [0, 0, 1, 1], [], []>} : vector<8x32xf32>, vector<32x512xf32>, vector<8x512xf32> -> vector<8x512xf32>
    %c0_41 = arith.constant 0 : index
    %c2 = arith.constant 2 : index
    %98 = vector.load %arg5[%c0_41, %c2] : memref<32x4xf32, #tpu.memory_space<vmem>>, vector<1x1xf32>
    %99 = vector.extract_strided_slice %97 {offsets = [0, 0], sizes = [1, 512], strides = [1, 1]} : vector<8x512xf32> to vector<1x512xf32>
    %100 = vector.broadcast %98 : vector<1x1xf32> to vector<1x512xf32>
    %101 = arith.addf %99, %100 : vector<1x512xf32>
    %102 = arith.negf %101 : vector<1x512xf32>
    %103 = math.exp %102 : vector<1x512xf32>
    %cst_42 = arith.constant 1.000000e+00 : f32
    %104 = vector.broadcast %cst_42 : f32 to vector<1x512xf32>
    %105 = arith.addf %104, %103 : vector<1x512xf32>
    %106 = arith.divf %104, %105 : vector<1x512xf32>
    %107 = vector.extract_strided_slice %106 {offsets = [0, 0], sizes = [1, 256], strides = [1, 1]} : vector<1x512xf32> to vector<1x256xf32>
    %108 = vector.extract_strided_slice %106 {offsets = [0, 0], sizes = [1, 256], strides = [1, 1]} : vector<1x512xf32> to vector<1x256xf32>
    %109 = vector.extract_strided_slice %106 {offsets = [0, 0], sizes = [1, 256], strides = [1, 1]} : vector<1x512xf32> to vector<1x256xf32>
    %110 = vector.extract_strided_slice %106 {offsets = [0, 0], sizes = [1, 256], strides = [1, 1]} : vector<1x512xf32> to vector<1x256xf32>
    %111 = vector.extract_strided_slice %106 {offsets = [0, 256], sizes = [1, 256], strides = [1, 1]} : vector<1x512xf32> to vector<1x256xf32>
    %112 = vector.extract_strided_slice %106 {offsets = [0, 256], sizes = [1, 256], strides = [1, 1]} : vector<1x512xf32> to vector<1x256xf32>
    %113 = vector.extract_strided_slice %106 {offsets = [0, 256], sizes = [1, 256], strides = [1, 1]} : vector<1x512xf32> to vector<1x256xf32>
    %114 = vector.extract_strided_slice %106 {offsets = [0, 256], sizes = [1, 256], strides = [1, 1]} : vector<1x512xf32> to vector<1x256xf32>
    %115 = tpu.concatenate %107, %108, %109, %110, %111, %112, %113, %114 in 0 : vector<1x256xf32>, vector<1x256xf32>, vector<1x256xf32>, vector<1x256xf32>, vector<1x256xf32>, vector<1x256xf32>, vector<1x256xf32>, vector<1x256xf32> -> vector<8x256xf32>
    %c0_43 = arith.constant 0 : index
    %c0_44 = arith.constant 0 : index
    %116 = vector.load %arg2[%c0_43, %c0_44] : memref<8x256xf32, #tpu.memory_space<vmem>>, vector<8x256xf32>
    %117 = arith.mulf %115, %116 : vector<8x256xf32>
    %c0_45 = arith.constant 0 : index
    %c0_46 = arith.constant 0 : index
    %118 = vector.load %arg7[%c0_45, %c0_46] : memref<8x256xf32, #tpu.memory_space<vmem>>, vector<8x256xf32>
    tpu.vector_store %arg7[%c0_45, %c0_46], %117 {strides = array<i32>} : memref<8x256xf32, #tpu.memory_space<vmem>>, vector<8x256xf32>,
    return
  }
  func.func @transform_0(%arg0: i32) -> (i32, i32) {
    %c0_i32 = arith.constant 0 : i32
    %c0_i32_0 = arith.constant 0 : i32
    %c0_i32_1 = arith.constant 0 : i32
    return %c0_i32, %c0_i32_0 : i32, i32
  }
  func.func @transform_1(%arg0: i32) -> (i32, i32) {
    %c0_i32 = arith.constant 0 : i32
    %c0_i32_0 = arith.constant 0 : i32
    %c0_i32_1 = arith.constant 0 : i32
    return %c0_i32, %c0_i32_0 : i32, i32
  }
  func.func @transform_2(%arg0: i32) -> (i32, i32) {
    %c0_i32 = arith.constant 0 : i32
    %c0_i32_0 = arith.constant 0 : i32
    %c0_i32_1 = arith.constant 0 : i32
    return %c0_i32, %c0_i32_0 : i32, i32
  }
  func.func @transform_3(%arg0: i32) -> (i32, i32) {
    %c0_i32 = arith.constant 0 : i32
    %c0_i32_0 = arith.constant 0 : i32
    %c0_i32_1 = arith.constant 0 : i32
    return %c0_i32, %c0_i32_0 : i32, i32
  }
  func.func @transform_4(%arg0: i32) -> (i32, i32) {
    %c0_i32 = arith.constant 0 : i32
    %c0_i32_0 = arith.constant 0 : i32
    %c0_i32_1 = arith.constant 0 : i32
    return %c0_i32, %c0_i32_0 : i32, i32
  }
  func.func @transform_5(%arg0: i32) -> (i32, i32) {
    %c0_i32 = arith.constant 0 : i32
    %c0_i32_0 = arith.constant 0 : i32
    %c0_i32_1 = arith.constant 0 : i32
    return %c0_i32, %c0_i32_0 : i32, i32
  }
  func.func @transform_6(%arg0: i32) -> (i32, i32) {
    %c0_i32 = arith.constant 0 : i32
    %c0_i32_0 = arith.constant 0 : i32
    %c0_i32_1 = arith.constant 0 : i32
    return %c0_i32, %c0_i32_0 : i32, i32
  }
}

</mosaic_0001>

<llo_original>
// kernel: timestep_aware_attention.1
$region0: #{timestep_aware_attention.1}
  #allocation0 [shape = 'u32[]', space=smem, size = 0x4, offset = 0x4, fixed_abs, tag = 'smem constant byte address 0x4 - core index']
  #allocation1 [shape = 'u32[144,128]{1,0:T(1,128)}', space=vmem, size = 0x12000, scoped, tag = 'internal scratch']
  #allocation2 [shape = 'f32[64,512]{1,0:T(8,128)}', space=vmem, size = 0x20000, scoped, tag = 'scratch operand']
  %s0 = inlined_call_operand.vmem [shape: f32[4,768], index: 0, kind: input, shape index: {}]
  %s1 = inlined_call_operand.vmem [shape: f32[8,256], index: 1, kind: input, shape index: {}]
  %s2 = inlined_call_operand.vmem [shape: f32[9,256], index: 2, kind: input, shape index: {}]
  %s3 = inlined_call_operand.vmem [shape: f32[32,64], index: 3, kind: input, shape index: {}]
  %s4 = inlined_call_operand.vmem [shape: f32[32,4], index: 4, kind: input, shape index: {}]
  %s5 = inlined_call_operand.vmem [shape: f32[8,32], index: 5, kind: input, shape index: {}]
  %s6 = inlined_call_operand.vmem [shape: f32[8,256], index: 6, kind: output, shape index: {}]
  %s7 = sld [smem:[#allocation0]]
  $region34: #{timestep_aware_attention.1} parent=0
    _
  %s9 = ssub.s32 1, %s7
  %s10 = scalar_select 0, %s9, %s7
  // Predicated region
  $region2: #{timestep_aware_attention.1} parent=0 // pred_check
    _
  $region3: #{timestep_aware_attention.1} parent=0 // pred_check_branch
    %12 = sbr.rel (0) target = $region5
  $region4: #{timestep_aware_attention.1} parent=0 // pred_region
    _
  $region5: #{timestep_aware_attention.1} parent=0 // pred_fallthru
    _
  // Predicated region
  $region6: #{timestep_aware_attention.1} parent=0 // pred_check
    _
  $region7: #{timestep_aware_attention.1} parent=0 // pred_check_branch
    %14 = sbr.rel (0) target = $region9
  $region8: #{timestep_aware_attention.1} parent=0 // pred_region
    _
  $region9: #{timestep_aware_attention.1} parent=0 // pred_fallthru
    _
  // Predicated region
  $region10: #{timestep_aware_attention.1} parent=0 // pred_check
    _
  $region11: #{timestep_aware_attention.1} parent=0 // pred_check_branch
    %16 = sbr.rel (0) target = $region13
  $region12: #{timestep_aware_attention.1} parent=0 // pred_region
    _
  $region13: #{timestep_aware_attention.1} parent=0 // pred_fallthru
    _
  // Predicated region
  $region14: #{timestep_aware_attention.1} parent=0 // pred_check
    _
  $region15: #{timestep_aware_attention.1} parent=0 // pred_check_branch
    %18 = sbr.rel (0) target = $region17
  $region16: #{timestep_aware_attention.1} parent=0 // pred_region
    _
  $region17: #{timestep_aware_attention.1} parent=0 // pred_fallthru
    _
  // Predicated region
  $region18: #{timestep_aware_attention.1} parent=0 // pred_check
    _
  $region19: #{timestep_aware_attention.1} parent=0 // pred_check_branch
    %20 = sbr.rel (0) target = $region21
  $region20: #{timestep_aware_attention.1} parent=0 // pred_region
    _
  $region21: #{timestep_aware_attention.1} parent=0 // pred_fallthru
    _
  // Predicated region
  $region22: #{timestep_aware_attention.1} parent=0 // pred_check
    _
  $region23: #{timestep_aware_attention.1} parent=0 // pred_check_branch
    %22 = sbr.rel (0) target = $region25
  $region24: #{timestep_aware_attention.1} parent=0 // pred_region
    _
  $region25: #{timestep_aware_attention.1} parent=0 // pred_fallthru
    _
  %v23 = vld [vmem:[%s2] sm:$0xff]
  %v24 = vld [vmem:[%s2 + $0x8] sm:$0xff]
  %v25 = vld [vmem:[%s2 + $0x10] sm:$0x1]
  %v26 = vld [vmem:[%s2 + $0x18] sm:$0x1]
  %v27 = vld [vmem:[%s0] sm:$0xff]
  %v28 = vld [vmem:[%s0 + $0x8] sm:$0xff]
  %v29 = vld [vmem:[%s0 + $0x10] sm:$0xf]
  %v30 = vlaneseq
  %v31 = vshrl.u32 %v30, 7
  %v32 = vsub.s32 0, %v31
  %v33 = vrot.slane %v23, %v32
  %v34 = vlaneseq
  %v35 = vshrl.u32 %v34, 7
  %v36 = vsub.s32 0, %v35
  %v37 = vrot.slane %v24, %v36
  %v40 = vcombine.low %v33, %v37
  %41 = vrot.lane.b32.xlu0 %v40, 111
  %v42 = vpop.permute.xlu0 %41
  %v43 = vrot.slane %v42, 4
  %vm44 = vcmask 908288
  %v45 = vsel %vm44, %v43, %v42
  %vm46 = vcmask 1043456
  %v47 = vsel %vm46, %v43, %v43
  %v48 = vsel %vm44, %v47, %v42
  %v52 = vmul.f32 %v27, %v45
  %v53 = vmul.f32 %v28, %v48
  %v54 = vmul.f32 %v29, %v43
  %v58 = vcombine.high %v52, %v52
  %v59 = vcombine.high %v53, %v53
  %60 = vrot.lane.b32.xlu0 %v52, 17
  %v61 = vpop.permute.xlu0 %60
  %62 = vrot.lane.b32.xlu0 %v58, 17
  %v63 = vpop.permute.xlu0 %62
  %64 = vrot.lane.b32.xlu0 %v53, 17
  %v65 = vpop.permute.xlu0 %64
  %66 = vrot.lane.b32.xlu0 %v59, 17
  %v67 = vpop.permute.xlu0 %66
  %68 = vrot.lane.b32.xlu0 %v54, 17
  %v69 = vpop.permute.xlu0 %68
  %vm70 = vcmask 138240
  %v71 = vsel %vm70, %v61, %v63
  %v72 = vsel %vm70, %v63, %v65
  %v73 = vsel %vm70, %v65, %v67
  %v74 = vsel %vm70, %v67, %v69
  %79 = vst [vmem:[#allocation2] sm:$0xf] %v71
  %80 = vst [vmem:[#allocation2 + $0x8] sm:$0xf] %v72
  %81 = vst [vmem:[#allocation2 + $0x10] sm:$0xf] %v73
  %82 = vst [vmem:[#allocation2 + $0x18] sm:$0xf] %v74
  %v83 = vld [vmem:[%s0] sm:$0xff]
  %v84 = vld [vmem:[%s0 + $0x8] sm:$0xff]
  %v85 = vld [vmem:[%s0 + $0x10] sm:$0xf]
  %v86 = vlaneseq
  %v87 = vshrl.u32 %v86, 7
  %v88 = vsub.s32 1, %v87
  %v89 = vrot.slane %v23, %v88
  %v90 = vlaneseq
  %v91 = vshrl.u32 %v90, 7
  %v92 = vsub.s32 1, %v91
  %v93 = vrot.slane %v24, %v92
  %v96 = vcombine.low %v89, %v93
  %97 = vrot.lane.b32.xlu0 %v96, 112
  %v98 = vpop.permute.xlu0 %97
  %v99 = vrot.slane %v98, 4
  %vm100 = vcmask 916480
  %v101 = vsel %vm100, %v99, %v98
  %v102 = vsel %vm46, %v99, %v99
  %v103 = vsel %vm100, %v102, %v98
  %v107 = vmul.f32 %v83, %v101
  %v108 = vmul.f32 %v84, %v103
  %v109 = vmul.f32 %v85, %v99
  %v113 = vcombine.low %v107, %v107
  %v114 = vcombine.low %v108, %v108
  %v115 = vcombine.low %v109, %v109
  %116 = vrot.lane.b32.xlu0 %v113, 16
  %v117 = vpop.permute.xlu0 %116
  %118 = vrot.lane.b32.xlu0 %v107, 16
  %v119 = vpop.permute.xlu0 %118
  %120 = vrot.lane.b32.xlu0 %v114, 16
  %v121 = vpop.permute.xlu0 %120
  %122 = vrot.lane.b32.xlu0 %v108, 16
  %v123 = vpop.permute.xlu0 %122
  %124 = vrot.lane.b32.xlu0 %v115, 16
  %v125 = vpop.permute.xlu0 %124
  %vm126 = vcmask 130048
  %v127 = vsel %vm126, %v117, %v119
  %v128 = vsel %vm126, %v119, %v121
  %v129 = vsel %vm126, %v121, %v123
  %v130 = vsel %vm126, %v123, %v125
  %135 = vst [vmem:[#allocation2] sm:$0xf0] %v127
  %136 = vst [vmem:[#allocation2 + $0x8] sm:$0xf0] %v128
  %137 = vst [vmem:[#allocation2 + $0x10] sm:$0xf0] %v129
  %138 = vst [vmem:[#allocation2 + $0x18] sm:$0xf0] %v130
  %v139 = vld [vmem:[%s0] sm:$0xff]
  %v140 = vld [vmem:[%s0 + $0x8] sm:$0xff]
  %v141 = vld [vmem:[%s0 + $0x10] sm:$0xf]
  %v142 = vlaneseq
  %v143 = vshrl.u32 %v142, 7
  %v144 = vsub.s32 2, %v143
  %v145 = vrot.slane %v23, %v144
  %v146 = vlaneseq
  %v147 = vshrl.u32 %v146, 7
  %v148 = vsub.s32 2, %v147
  %v149 = vrot.slane %v24, %v148
  %v152 = vcombine.low %v145, %v149
  %153 = vrot.lane.b32.xlu0 %v152, 113
  %v154 = vpop.permute.xlu0 %153
  %v155 = vrot.slane %v154, 4
  %vm156 = vcmask 924672
  %v157 = vsel %vm156, %v155, %v154
  %v158 = vsel %vm46, %v155, %v155
  %v159 = vsel %vm156, %v158, %v154
  %v163 = vmul.f32 %v139, %v157
  %v164 = vmul.f32 %v140, %v159
  %v165 = vmul.f32 %v141, %v155
  %v169 = vcombine.high %v163, %v163
  %v170 = vcombine.high %v164, %v164
  %171 = vrot.lane.b32.xlu0 %v163, 15
  %v172 = vpop.permute.xlu0 %171
  %173 = vrot.lane.b32.xlu0 %v169, 15
  %v174 = vpop.permute.xlu0 %173
  %175 = vrot.lane.b32.xlu0 %v164, 15
  %v176 = vpop.permute.xlu0 %175
  %177 = vrot.lane.b32.xlu0 %v170, 15
  %v178 = vpop.permute.xlu0 %177
  %179 = vrot.lane.b32.xlu0 %v165, 15
  %v180 = vpop.permute.xlu0 %179
  %vm181 = vcmask 121856
  %v182 = vsel %vm181, %v172, %v174
  %v183 = vsel %vm181, %v174, %v176
  %v184 = vsel %vm181, %v176, %v178
  %v185 = vsel %vm181, %v178, %v180
  %190 = vst [vmem:[#allocation2 + $0x20] sm:$0xf] %v182
  %191 = vst [vmem:[#allocation2 + $0x28] sm:$0xf] %v183
  %192 = vst [vmem:[#allocation2 + $0x30] sm:$0xf] %v184
  %193 = vst [vmem:[#allocation2 + $0x38] sm:$0xf] %v185
  %v194 = vld [vmem:[%s0] sm:$0xff]
  %v195 = vld [vmem:[%s0 + $0x8] sm:$0xff]
  %v196 = vld [vmem:[%s0 + $0x10] sm:$0xf]
  %v197 = vlaneseq
  %v198 = vshrl.u32 %v197, 7
  %v199 = vsub.s32 3, %v198
  %v200 = vrot.slane %v23, %v199
  %v201 = vlaneseq
  %v202 = vshrl.u32 %v201, 7
  %v203 = vsub.s32 3, %v202
  %v204 = vrot.slane %v24, %v203
  %v207 = vcombine.low %v200, %v204
  %208 = vrot.lane.b32.xlu0 %v207, 127
  %v209 = vpop.permute.xlu0 %208
  %v210 = vrot.slane %v209, 4
  %vm211 = vcmask 1039360
  %v212 = vsel %vm211, %v210, %v209
  %v213 = vsel %vm46, %v210, %v210
  %v214 = vsel %vm211, %v213, %v209
  %v218 = vmul.f32 %v194, %v212
  %v219 = vmul.f32 %v195, %v214
  %v220 = vmul.f32 %v196, %v210
  %v224 = vcombine.low %v218, %v218
  %v225 = vcombine.low %v219, %v219
  %v226 = vcombine.low %v220, %v220
  %227 = vrot.lane.b32.xlu0 %v224, 1
  %v228 = vpop.permute.xlu0 %227
  %229 = vrot.lane.b32.xlu0 %v218, 1
  %v230 = vpop.permute.xlu0 %229
  %231 = vrot.lane.b32.xlu0 %v225, 1
  %v232 = vpop.permute.xlu0 %231
  %233 = vrot.lane.b32.xlu0 %v219, 1
  %v234 = vpop.permute.xlu0 %233
  %235 = vrot.lane.b32.xlu0 %v226, 1
  %v236 = vpop.permute.xlu0 %235
  %vm237 = vcmask 7168
  %v238 = vsel %vm237, %v228, %v230
  %v239 = vsel %vm237, %v230, %v232
  %v240 = vsel %vm237, %v232, %v234
  %v241 = vsel %vm237, %v234, %v236
  %246 = vst [vmem:[#allocation2 + $0x20] sm:$0xf0] %v238
  %247 = vst [vmem:[#allocation2 + $0x28] sm:$0xf0] %v239
  %248 = vst [vmem:[#allocation2 + $0x30] sm:$0xf0] %v240
  %249 = vst [vmem:[#allocation2 + $0x38] sm:$0xf0] %v241
  %v250 = vld [vmem:[%s0 + $0x4] sm:$0xff]
  %v251 = vld [vmem:[%s0 + $0xc] sm:$0xff]
  %v252 = vlaneseq
  %v253 = vshrl.u32 %v252, 7
  %v254 = vsub.s32 4, %v253
  %v255 = vrot.slane %v23, %v254
  %v256 = vlaneseq
  %v257 = vshrl.u32 %v256, 7
  %v258 = vsub.s32 4, %v257
  %v259 = vrot.slane %v24, %v258
  %v262 = vcombine.low %v255, %v259
  %v264 = vmul.f32 %v250, %v262
  %v265 = vmul.f32 %v251, %v262
  %v268 = vcombine.high %v264, %v264
  %v269 = vcombine.high %v265, %v265
  %272 = vst [vmem:[#allocation2 + $0x40] sm:$0xf] %v264
  %273 = vst [vmem:[#allocation2 + $0x48] sm:$0xf] %v268
  %274 = vst [vmem:[#allocation2 + $0x50] sm:$0xf] %v265
  %275 = vst [vmem:[#allocation2 + $0x58] sm:$0xf] %v269
  %v276 = vld [vmem:[%s0 + $0x4] sm:$0xff]
  %v277 = vld [vmem:[%s0 + $0xc] sm:$0xff]
  %v278 = vld [vmem:[%s0 + $0x14] sm:$0xf]
  %v279 = vlaneseq
  %v280 = vshrl.u32 %v279, 7
  %v281 = vsub.s32 5, %v280
  %v282 = vrot.slane %v23, %v281
  %v283 = vlaneseq
  %v284 = vshrl.u32 %v283, 7
  %v285 = vsub.s32 5, %v284
  %v286 = vrot.slane %v24, %v285
  %v289 = vcombine.low %v282, %v286
  %290 = vrot.lane.b32.xlu0 %v289, 1
  %v291 = vpop.permute.xlu0 %290
  %v292 = vrot.slane %v291, 4
  %v293 = vsel %vm237, %v292, %v291
  %v294 = vsel %vm46, %v292, %v292
  %v295 = vsel %vm237, %v294, %v291
  %v299 = vmul.f32 %v276, %v293
  %v300 = vmul.f32 %v277, %v295
  %v301 = vmul.f32 %v278, %v292
  %v305 = vcombine.low %v299, %v299
  %v306 = vcombine.low %v300, %v300
  %v307 = vcombine.low %v301, %v301
  %308 = vrot.lane.b32.xlu0 %v305, 127
  %v309 = vpop.permute.xlu0 %308
  %310 = vrot.lane.b32.xlu0 %v299, 127
  %v311 = vpop.permute.xlu0 %310
  %312 = vrot.lane.b32.xlu0 %v306, 127
  %v313 = vpop.permute.xlu0 %312
  %314 = vrot.lane.b32.xlu0 %v300, 127
  %v315 = vpop.permute.xlu0 %314
  %316 = vrot.lane.b32.xlu0 %v307, 127
  %v317 = vpop.permute.xlu0 %316
  %v318 = vsel %vm211, %v309, %v311
  %v319 = vsel %vm211, %v311, %v313
  %v320 = vsel %vm211, %v313, %v315
  %v321 = vsel %vm211, %v315, %v317
  %326 = vst [vmem:[#allocation2 + $0x40] sm:$0xf0] %v318
  %327 = vst [vmem:[#allocation2 + $0x48] sm:$0xf0] %v319
  %328 = vst [vmem:[#allocation2 + $0x50] sm:$0xf0] %v320
  %329 = vst [vmem:[#allocation2 + $0x58] sm:$0xf0] %v321
  %v330 = vld [vmem:[%s0 + $0x4] sm:$0xff]
  %v331 = vld [vmem:[%s0 + $0xc] sm:$0xff]
  %v332 = vld [vmem:[%s0 + $0x14] sm:$0xf]
  %v333 = vlaneseq
  %v334 = vshrl.u32 %v333, 7
  %v335 = vsub.s32 6, %v334
  %v336 = vrot.slane %v23, %v335
  %v337 = vlaneseq
  %v338 = vshrl.u32 %v337, 7
  %v339 = vsub.s32 6, %v338
  %v340 = vrot.slane %v24, %v339
  %v343 = vcombine.low %v336, %v340
  %344 = vrot.lane.b32.xlu0 %v343, 15
  %v345 = vpop.permute.xlu0 %344
  %v346 = vrot.slane %v345, 4
  %v347 = vsel %vm181, %v346, %v345
  %v348 = vsel %vm46, %v346, %v346
  %v349 = vsel %vm181, %v348, %v345
  %v353 = vmul.f32 %v330, %v347
  %v354 = vmul.f32 %v331, %v349
  %v355 = vmul.f32 %v332, %v346
  %v359 = vcombine.high %v353, %v353
  %v360 = vcombine.high %v354, %v354
  %361 = vrot.lane.b32.xlu0 %v353, 113
  %v362 = vpop.permute.xlu0 %361
  %363 = vrot.lane.b32.xlu0 %v359, 113
  %v364 = vpop.permute.xlu0 %363
  %365 = vrot.lane.b32.xlu0 %v354, 113
  %v366 = vpop.permute.xlu0 %365
  %367 = vrot.lane.b32.xlu0 %v360, 113
  %v368 = vpop.permute.xlu0 %367
  %369 = vrot.lane.b32.xlu0 %v355, 113
  %v370 = vpop.permute.xlu0 %369
  %v371 = vsel %vm156, %v362, %v364
  %v372 = vsel %vm156, %v364, %v366
  %v373 = vsel %vm156, %v366, %v368
  %v374 = vsel %vm156, %v368, %v370
  %379 = vst [vmem:[#allocation2 + $0x60] sm:$0xf] %v371
  %380 = vst [vmem:[#allocation2 + $0x68] sm:$0xf] %v372
  %381 = vst [vmem:[#allocation2 + $0x70] sm:$0xf] %v373
  %382 = vst [vmem:[#allocation2 + $0x78] sm:$0xf] %v374
  %v383 = vld [vmem:[%s0 + $0x4] sm:$0xff]
  %v384 = vld [vmem:[%s0 + $0xc] sm:$0xff]
  %v385 = vld [vmem:[%s0 + $0x14] sm:$0xf]
  %v386 = vlaneseq
  %v387 = vshrl.u32 %v386, 7
  %v388 = vsub.s32 7, %v387
  %v389 = vrot.slane %v23, %v388
  %v390 = vlaneseq
  %v391 = vshrl.u32 %v390, 7
  %v392 = vsub.s32 7, %v391
  %v393 = vrot.slane %v24, %v392
  %v396 = vcombine.low %v389, %v393
  %397 = vrot.lane.b32.xlu0 %v396, 16
  %v398 = vpop.permute.xlu0 %397
  %v399 = vrot.slane %v398, 4
  %v400 = vsel %vm126, %v399, %v398
  %v401 = vsel %vm46, %v399, %v399
  %v402 = vsel %vm126, %v401, %v398
  %v406 = vmul.f32 %v383, %v400
  %v407 = vmul.f32 %v384, %v402
  %v408 = vmul.f32 %v385, %v399
  %v412 = vcombine.low %v406, %v406
  %v413 = vcombine.low %v407, %v407
  %v414 = vcombine.low %v408, %v408
  %415 = vrot.lane.b32.xlu0 %v412, 112
  %v416 = vpop.permute.xlu0 %415
  %417 = vrot.lane.b32.xlu0 %v406, 112
  %v418 = vpop.permute.xlu0 %417
  %419 = vrot.lane.b32.xlu0 %v413, 112
  %v420 = vpop.permute.xlu0 %419
  %421 = vrot.lane.b32.xlu0 %v407, 112
  %v422 = vpop.permute.xlu0 %421
  %423 = vrot.lane.b32.xlu0 %v414, 112
  %v424 = vpop.permute.xlu0 %423
  %v425 = vsel %vm100, %v416, %v418
  %v426 = vsel %vm100, %v418, %v420
  %v427 = vsel %vm100, %v420, %v422
  %v428 = vsel %vm100, %v422, %v424
  %433 = vst [vmem:[#allocation2 + $0x60] sm:$0xf0] %v425
  %434 = vst [vmem:[#allocation2 + $0x68] sm:$0xf0] %v426
  %435 = vst [vmem:[#allocation2 + $0x70] sm:$0xf0] %v427
  %436 = vst [vmem:[#allocation2 + $0x78] sm:$0xf0] %v428
  %v437 = vld [vmem:[%s0 + $0x4] sm:$0xff]
  %v438 = vld [vmem:[%s0 + $0xc] sm:$0xff]
  %v439 = vld [vmem:[%s0 + $0x14] sm:$0xf]
  %v440 = vlaneseq
  %v441 = vshrl.u32 %v440, 7
  %v442 = vsub.s32 0, %v441
  %v443 = vrot.slane %v25, %v442
  %v444 = vlaneseq
  %v445 = vshrl.u32 %v444, 7
  %v446 = vsub.s32 0, %v445
  %v447 = vrot.slane %v26, %v446
  %v450 = vcombine.low %v443, %v447
  %451 = vrot.lane.b32.xlu0 %v450, 17
  %v452 = vpop.permute.xlu0 %451
  %v453 = vrot.slane %v452, 4
  %v454 = vsel %vm70, %v453, %v452
  %v455 = vsel %vm46, %v453, %v453
  %v456 = vsel %vm70, %v455, %v452
  %v460 = vmul.f32 %v437, %v454
  %v461 = vmul.f32 %v438, %v456
  %v462 = vmul.f32 %v439, %v453
  %v466 = vcombine.high %v460, %v460
  %v467 = vcombine.high %v461, %v461
  %468 = vrot.lane.b32.xlu0 %v460, 111
  %v469 = vpop.permute.xlu0 %468
  %470 = vrot.lane.b32.xlu0 %v466, 111
  %v471 = vpop.permute.xlu0 %470
  %472 = vrot.lane.b32.xlu0 %v461, 111
  %v473 = vpop.permute.xlu0 %472
  %474 = vrot.lane.b32.xlu0 %v467, 111
  %v475 = vpop.permute.xlu0 %474
  %476 = vrot.lane.b32.xlu0 %v462, 111
  %v477 = vpop.permute.xlu0 %476
  %v478 = vsel %vm44, %v469, %v471
  %v479 = vsel %vm44, %v471, %v473
  %v480 = vsel %vm44, %v473, %v475
  %v481 = vsel %vm44, %v475, %v477
  %486 = vst [vmem:[#allocation2 + $0x80] sm:$0xf] %v478
  %487 = vst [vmem:[#allocation2 + $0x88] sm:$0xf] %v479
  %488 = vst [vmem:[#allocation2 + $0x90] sm:$0xf] %v480
  %489 = vst [vmem:[#allocation2 + $0x98] sm:$0xf] %v481
  %v490 = vlaneseq
  %v491 = vand.u32 %v490, 127
  %v492 = vadd.s32 %v491, 128
  %v493 = vadd.s32 %v491, 256
  %v494 = vadd.s32 %v491, 384
  %vm495 = vcmp.ge.s32.totalorder %v491, 0
  %vm496 = vcmp.ge.s32.totalorder %v492, 0
  %vm497 = vcmp.ge.s32.totalorder %v493, 0
  %vm498 = vcmp.ge.s32.totalorder %v494, 0
  %vm499 = vcmp.lt.s32.totalorder %v491, 256
  %vm500 = vcmp.lt.s32.totalorder %v492, 256
  %vm501 = vcmp.lt.s32.totalorder %v493, 256
  %vm502 = vcmp.lt.s32.totalorder %v494, 256
  %vm503 = vmand %vm495, %vm499
  %vm504 = vmand %vm496, %vm500
  %vm505 = vmand %vm497, %vm501
  %vm506 = vmand %vm498, %vm502
  %v507 = vsel %vm503, 1, 0
  %v508 = vsel %vm504, 1, 0
  %v509 = vsel %vm505, 1, 0
  %v510 = vsel %vm506, 1, 0
  %v511 = vcvt.s32.f32 %v507
  %v512 = vcvt.s32.f32 %v508
  %v513 = vcvt.s32.f32 %v509
  %v514 = vcvt.s32.f32 %v510
  %v515 = vmul.f32 %v23, %v511
  %v516 = vmul.f32 %v24, %v512
  %v517 = vmul.f32 %v23, %v513
  %v518 = vmul.f32 %v24, %v514
  %v519 = vmul.f32 %v25, %v511
  %v520 = vmul.f32 %v26, %v512
  %v521 = vmul.f32 %v25, %v513
  %v522 = vmul.f32 %v26, %v514
  %v531 = vrot.slane %v515, 4
  %v532 = vrot.slane %v516, 4
  %v533 = vrot.slane %v517, 4
  %v534 = vrot.slane %v518, 4
  %v535 = vrot.slane %v519, 4
  %v536 = vsel %vm46, %v531, %v535
  %v537 = vrot.slane %v520, 4
  %v538 = vsel %vm46, %v532, %v537
  %v539 = vrot.slane %v521, 4
  %v540 = vsel %vm46, %v533, %v539
  %v541 = vrot.slane %v522, 4
  %v542 = vsel %vm46, %v534, %v541
  %551 = vst [vmem:[#allocation2 + $0x80] sm:$0xf0] %v531
  %552 = vst [vmem:[#allocation2 + $0x88] sm:$0xf0] %v532
  %553 = vst [vmem:[#allocation2 + $0x90] sm:$0xf0] %v533
  %554 = vst [vmem:[#allocation2 + $0x98] sm:$0xf0] %v534
  %555 = vst [vmem:[#allocation2 + $0xa0] sm:$0x1f] %v536
  %556 = vst [vmem:[#allocation2 + $0xa8] sm:$0x1f] %v538
  %557 = vst [vmem:[#allocation2 + $0xb0] sm:$0x1f] %v540
  %558 = vst [vmem:[#allocation2 + $0xb8] sm:$0x1f] %v542
  %vm559 = vcmp.ge.s32.totalorder %v491, 256
  %vm560 = vcmp.ge.s32.totalorder %v492, 256
  %vm561 = vcmp.ge.s32.totalorder %v493, 256
  %vm562 = vcmp.ge.s32.totalorder %v494, 256
  %vm563 = vcmp.lt.s32.totalorder %v491, 512
  %vm564 = vcmp.lt.s32.totalorder %v492, 512
  %vm565 = vcmp.lt.s32.totalorder %v493, 512
  %vm566 = vcmp.lt.s32.totalorder %v494, 512
  %vm567 = vmand %vm559, %vm563
  %vm568 = vmand %vm560, %vm564
  %vm569 = vmand %vm561, %vm565
  %vm570 = vmand %vm562, %vm566
  %v571 = vsel %vm567, 1, 0
  %v572 = vsel %vm568, 1, 0
  %v573 = vsel %vm569, 1, 0
  %v574 = vsel %vm570, 1, 0
  %v575 = vcvt.s32.f32 %v571
  %v576 = vcvt.s32.f32 %v572
  %v577 = vcvt.s32.f32 %v573
  %v578 = vcvt.s32.f32 %v574
  %v579 = vmul.f32 %v23, %v575
  %v580 = vmul.f32 %v24, %v576
  %v581 = vmul.f32 %v23, %v577
  %v582 = vmul.f32 %v24, %v578
  %v583 = vmul.f32 %v25, %v575
  %v584 = vmul.f32 %v26, %v576
  %v585 = vmul.f32 %v25, %v577
  %v586 = vmul.f32 %v26, %v578
  %vm595 = vcmask 1044480
  %v596 = vrot.slane %v579, 3
  %v597 = vrot.slane %v580, 3
  %v598 = vrot.slane %v581, 3
  %v599 = vrot.slane %v582, 3
  %v600 = vrot.slane %v583, 3
  %v601 = vsel %vm595, %v596, %v600
  %v602 = vrot.slane %v584, 3
  %v603 = vsel %vm595, %v597, %v602
  %v604 = vrot.slane %v585, 3
  %v605 = vsel %vm595, %v598, %v604
  %v606 = vrot.slane %v586, 3
  %v607 = vsel %vm595, %v599, %v606
  %616 = vst [vmem:[#allocation2 + $0xa0] sm:$0xe0] %v596
  %617 = vst [vmem:[#allocation2 + $0xa8] sm:$0xe0] %v597
  %618 = vst [vmem:[#allocation2 + $0xb0] sm:$0xe0] %v598
  %619 = vst [vmem:[#allocation2 + $0xb8] sm:$0xe0] %v599
  %620 = vst [vmem:[#allocation2 + $0xc0] sm:$0x3f] %v601
  %621 = vst [vmem:[#allocation2 + $0xc8] sm:$0x3f] %v603
  %622 = vst [vmem:[#allocation2 + $0xd0] sm:$0x3f] %v605
  %623 = vst [vmem:[#allocation2 + $0xd8] sm:$0x3f] %v607
  %624 = vst [vmem:[#allocation2 + $0xc0] sm:$0xc0] 0.0
  %625 = vst [vmem:[#allocation2 + $0xc8] sm:$0xc0] 0.0
  %626 = vst [vmem:[#allocation2 + $0xd0] sm:$0xc0] 0.0
  %627 = vst [vmem:[#allocation2 + $0xd8] sm:$0xc0] 0.0
  %628 = vst [vmem:[#allocation2 + $0xe0] sm:$0xff] 0.0
  %629 = vst [vmem:[#allocation2 + $0xe8] sm:$0xff] 0.0
  %630 = vst [vmem:[#allocation2 + $0xf0] sm:$0xff] 0.0
  %631 = vst [vmem:[#allocation2 + $0xf8] sm:$0xff] 0.0
  %v632 = vld [vmem:[%s3] sm:$0xff]
  %v633 = vld [vmem:[%s3 + $0x8] sm:$0xff]
  %v634 = vld [vmem:[%s3 + $0x10] sm:$0xff]
  %v635 = vld [vmem:[%s3 + $0x18] sm:$0xff]
  %v636 = vld [vmem:[#allocation2] sm:$0xff]
  %v637 = vld [vmem:[#allocation2 + $0x8] sm:$0xff]
  %v638 = vld [vmem:[#allocation2 + $0x10] sm:$0xff]
  %v639 = vld [vmem:[#allocation2 + $0x18] sm:$0xff]
  %v640 = vld [vmem:[#allocation2 + $0x20] sm:$0xff]
  %v641 = vld [vmem:[#allocation2 + $0x28] sm:$0xff]
  %v642 = vld [vmem:[#allocation2 + $0x30] sm:$0xff]
  %v643 = vld [vmem:[#allocation2 + $0x38] sm:$0xff]
  %v644 = vld [vmem:[#allocation2 + $0x40] sm:$0xff]
  %v645 = vld [vmem:[#allocation2 + $0x48] sm:$0xff]
  %v646 = vld [vmem:[#allocation2 + $0x50] sm:$0xff]
  %v647 = vld [vmem:[#allocation2 + $0x58] sm:$0xff]
  %v648 = vld [vmem:[#allocation2 + $0x60] sm:$0xff]
  %v649 = vld [vmem:[#allocation2 + $0x68] sm:$0xff]
  %v650 = vld [vmem:[#allocation2 + $0x70] sm:$0xff]
  %v651 = vld [vmem:[#allocation2 + $0x78] sm:$0xff]
  %v652 = vld [vmem:[#allocation2 + $0x80] sm:$0xff]
  %v653 = vld [vmem:[#allocation2 + $0x88] sm:$0xff]
  %v654 = vld [vmem:[#allocation2 + $0x90] sm:$0xff]
  %v655 = vld [vmem:[#allocation2 + $0x98] sm:$0xff]
  %v656 = vld [vmem:[#allocation2 + $0xa0] sm:$0xff]
  %v657 = vld [vmem:[#allocation2 + $0xa8] sm:$0xff]
  %v658 = vld [vmem:[#allocation2 + $0xb0] sm:$0xff]
  %v659 = vld [vmem:[#allocation2 + $0xb8] sm:$0xff]
  %v660 = vld [vmem:[#allocation2 + $0xc0] sm:$0xff]
  %v661 = vld [vmem:[#allocation2 + $0xc8] sm:$0xff]
  %v662 = vld [vmem:[#allocation2 + $0xd0] sm:$0xff]
  %v663 = vld [vmem:[#allocation2 + $0xd8] sm:$0xff]
  %v664 = vld [vmem:[#allocation2 + $0xe0] sm:$0xff]
  %v665 = vld [vmem:[#allocation2 + $0xe8] sm:$0xff]
  %v666 = vld [vmem:[#allocation2 + $0xf0] sm:$0xff]
  %v667 = vld [vmem:[#allocation2 + $0xf8] sm:$0xff]
  %vm668 = vcmask 523264
  %v670 = vsel %vm668, %v632, 0
  %v673 = vsel %vm668, %v633, 0
  %v676 = vsel %vm668, %v634, 0
  %v679 = vsel %vm668, %v635, 0
  %681 = vmatprep.subr.mxu0 0.0
  %682 = vmatpush1.msra.mxu0 0.0
  %683 = vmatprep.subr.mxu0 0.0
  %684 = vmatpush1.msra.mxu0 0.0
  %685 = vmatprep.subr.mxu0 0.0
  %686 = vmatpush1.msra.mxu0 0.0
  %687 = vmatprep.subr.mxu0 0.0
  %688 = vmatpush1.msra.mxu0 0.0
  %689 = vmatprep.subr.mxu0 0.0
  %690 = vmatpush1.msra.mxu0 0.0
  %691 = vmatprep.subr.mxu0 0.0
  %692 = vmatpush1.msra.mxu0 0.0
  %693 = vmatprep.subr.mxu0 0.0
  %694 = vmatpush1.msra.mxu0 0.0
  %695 = vmatprep.subr.mxu0 0.0
  %696 = vmatpush1.msra.mxu0 0.0
  %697 = vmatprep.subr.mxu0 %v665
  %698 = vmatpush1.msra.mxu0 %v664
  %699 = vmatprep.subr.mxu0 %v661
  %700 = vmatpush1.msra.mxu0 %v660
  %701 = vmatprep.subr.mxu0 %v657
  %702 = vmatpush1.msra.mxu0 %v656
  %703 = vmatprep.subr.mxu0 %v653
  %704 = vmatpush1.msra.mxu0 %v652
  %705 = vmatprep.subr.mxu0 %v649
  %706 = vmatpush1.msra.mxu0 %v648
  %707 = vmatprep.subr.mxu0 %v645
  %708 = vmatpush1.msra.mxu0 %v644
  %709 = vmatprep.subr.mxu0 %v641
  %710 = vmatpush1.msra.mxu0 %v640
  %711 = vmatprep.subr.mxu0 %v637
  %712 = vmatpush1.msra.mxu0 %v636
  %713 = vmatprep.subr.mxu0 0.0
  %714 = vmatpush2.msra.mxu0 0.0
  %715 = vmatprep.subr.mxu0 0.0
  %716 = vmatpush2.msra.mxu0 0.0
  %717 = vmatprep.subr.mxu0 0.0
  %718 = vmatpush2.msra.mxu0 0.0
  %719 = vmatprep.subr.mxu0 0.0
  %720 = vmatpush2.msra.mxu0 0.0
  %721 = vmatprep.subr.mxu0 0.0
  %722 = vmatpush2.msra.mxu0 0.0
  %723 = vmatprep.subr.mxu0 0.0
  %724 = vmatpush2.msra.mxu0 0.0
  %725 = vmatprep.subr.mxu0 0.0
  %726 = vmatpush2.msra.mxu0 0.0
  %727 = vmatprep.subr.mxu0 0.0
  %728 = vmatpush2.msra.mxu0 0.0
  %729 = vmatprep.subr.mxu0 0.0
  %730 = vmatpush2.msra.mxu0 0.0
  %731 = vmatprep.subr.mxu0 0.0
  %732 = vmatpush2.msra.mxu0 0.0
  %733 = vmatprep.subr.mxu0 0.0
  %734 = vmatpush2.msra.mxu0 0.0
  %735 = vmatprep.subr.mxu0 0.0
  %736 = vmatpush2.msra.mxu0 0.0
  %737 = vmatprep.subr.mxu0 0.0
  %738 = vmatpush2.msra.mxu0 0.0
  %739 = vmatprep.subr.mxu0 0.0
  %740 = vmatpush2.msra.mxu0 0.0
  %741 = vmatprep.subr.mxu0 0.0
  %742 = vmatpush2.msra.mxu0 0.0
  %743 = vmatprep.subr.mxu0 0.0
  %744 = vmatpush2.msra.mxu0 0.0
  %745 = vmatprep.mubr.f32.mxu0 0.0
  %746 = vmatmul.mubr.f32.gmra.mxu0 %v670
  %v747 = vpop.f32.mrf.mxu0
  %v748 = vadd.f32 0.0, %v747
  %v749 = vpop.f32.mrf.mxu0
  %v750 = vadd.f32 0.0, %v749
  %751 = vmatprep.mubr.f32.mxu0 0.0
  %752 = vmatmul.mubr.f32.gmra.mxu0 %v673
  %v753 = vpop.f32.mrf.mxu0
  %v754 = vadd.f32 0.0, %v753
  %v755 = vpop.f32.mrf.mxu0
  %v756 = vadd.f32 0.0, %v755
  %757 = vmatprep.mubr.f32.mxu0 0.0
  %758 = vmatmul.mubr.f32.gmra.mxu0 %v676
  %v759 = vpop.f32.mrf.mxu0
  %v760 = vadd.f32 0.0, %v759
  %v761 = vpop.f32.mrf.mxu0
  %v762 = vadd.f32 0.0, %v761
  %763 = vmatprep.mubr.f32.mxu0 0.0
  %764 = vmatmul.mubr.f32.gmra.mxu0 %v679
  %v765 = vpop.f32.mrf.mxu0
  %v766 = vadd.f32 0.0, %v765
  %v767 = vpop.f32.mrf.mxu0
  %v768 = vadd.f32 0.0, %v767
  %769 = vdwg.mxu0
  %770 = vmatprep.subr.mxu0 0.0
  %771 = vmatpush1.msra.mxu0 0.0
  %772 = vmatprep.subr.mxu0 0.0
  %773 = vmatpush1.msra.mxu0 0.0
  %774 = vmatprep.subr.mxu0 0.0
  %775 = vmatpush1.msra.mxu0 0.0
  %776 = vmatprep.subr.mxu0 0.0
  %777 = vmatpush1.msra.mxu0 0.0
  %778 = vmatprep.subr.mxu0 0.0
  %779 = vmatpush1.msra.mxu0 0.0
  %780 = vmatprep.subr.mxu0 0.0
  %781 = vmatpush1.msra.mxu0 0.0
  %782 = vmatprep.subr.mxu0 0.0
  %783 = vmatpush1.msra.mxu0 0.0
  %784 = vmatprep.subr.mxu0 0.0
  %785 = vmatpush1.msra.mxu0 0.0
  %786 = vmatprep.subr.mxu0 %v667
  %787 = vmatpush1.msra.mxu0 %v666
  %788 = vmatprep.subr.mxu0 %v663
  %789 = vmatpush1.msra.mxu0 %v662
  %790 = vmatprep.subr.mxu0 %v659
  %791 = vmatpush1.msra.mxu0 %v658
  %792 = vmatprep.subr.mxu0 %v655
  %793 = vmatpush1.msra.mxu0 %v654
  %794 = vmatprep.subr.mxu0 %v651
  %795 = vmatpush1.msra.mxu0 %v650
  %796 = vmatprep.subr.mxu0 %v647
  %797 = vmatpush1.msra.mxu0 %v646
  %798 = vmatprep.subr.mxu0 %v643
  %799 = vmatpush1.msra.mxu0 %v642
  %800 = vmatprep.subr.mxu0 %v639
  %801 = vmatpush1.msra.mxu0 %v638
  %802 = vmatprep.subr.mxu0 0.0
  %803 = vmatpush2.msra.mxu0 0.0
  %804 = vmatprep.subr.mxu0 0.0
  %805 = vmatpush2.msra.mxu0 0.0
  %806 = vmatprep.subr.mxu0 0.0
  %807 = vmatpush2.msra.mxu0 0.0
  %808 = vmatprep.subr.mxu0 0.0
  %809 = vmatpush2.msra.mxu0 0.0
  %810 = vmatprep.subr.mxu0 0.0
  %811 = vmatpush2.msra.mxu0 0.0
  %812 = vmatprep.subr.mxu0 0.0
  %813 = vmatpush2.msra.mxu0 0.0
  %814 = vmatprep.subr.mxu0 0.0
  %815 = vmatpush2.msra.mxu0 0.0
  %816 = vmatprep.subr.mxu0 0.0
  %817 = vmatpush2.msra.mxu0 0.0
  %818 = vmatprep.subr.mxu0 0.0
  %819 = vmatpush2.msra.mxu0 0.0
  %820 = vmatprep.subr.mxu0 0.0
  %821 = vmatpush2.msra.mxu0 0.0
  %822 = vmatprep.subr.mxu0 0.0
  %823 = vmatpush2.msra.mxu0 0.0
  %824 = vmatprep.subr.mxu0 0.0
  %825 = vmatpush2.msra.mxu0 0.0
  %826 = vmatprep.subr.mxu0 0.0
  %827 = vmatpush2.msra.mxu0 0.0
  %828 = vmatprep.subr.mxu0 0.0
  %829 = vmatpush2.msra.mxu0 0.0
  %830 = vmatprep.subr.mxu0 0.0
  %831 = vmatpush2.msra.mxu0 0.0
  %832 = vmatprep.subr.mxu0 0.0
  %833 = vmatpush2.msra.mxu0 0.0
  %834 = vmatprep.mubr.f32.mxu0 0.0
  %835 = vmatmul.mubr.f32.gmra.mxu0 %v670
  %v836 = vpop.f32.mrf.mxu0
  %v837 = vadd.f32 0.0, %v836
  %v838 = vpop.f32.mrf.mxu0
  %v839 = vadd.f32 0.0, %v838
  %840 = vmatprep.mubr.f32.mxu0 0.0
  %841 = vmatmul.mubr.f32.gmra.mxu0 %v673
  %v842 = vpop.f32.mrf.mxu0
  %v843 = vadd.f32 0.0, %v842
  %v844 = vpop.f32.mrf.mxu0
  %v845 = vadd.f32 0.0, %v844
  %846 = vmatprep.mubr.f32.mxu0 0.0
  %847 = vmatmul.mubr.f32.gmra.mxu0 %v676
  %v848 = vpop.f32.mrf.mxu0
  %v849 = vadd.f32 0.0, %v848
  %v850 = vpop.f32.mrf.mxu0
  %v851 = vadd.f32 0.0, %v850
  %852 = vmatprep.mubr.f32.mxu0 0.0
  %853 = vmatmul.mubr.f32.gmra.mxu0 %v679
  %v854 = vpop.f32.mrf.mxu0
  %v855 = vadd.f32 0.0, %v854
  %v856 = vpop.f32.mrf.mxu0
  %v857 = vadd.f32 0.0, %v856
  %858 = vdwg.mxu0
  %v859 = vadd.f32 %v748, %v750
  %v860 = vadd.f32 %v859, %v837
  %v861 = vadd.f32 %v860, %v839
  %862 = vadd.xlane.f32.xlu0 %v861
  %v863 = vpop.xlane.xlu0 %862
  %v864 = vadd.f32 %v754, %v756
  %v865 = vadd.f32 %v864, %v843
  %v866 = vadd.f32 %v865, %v845
  %867 = vadd.xlane.f32.xlu0 %v866
  %v868 = vpop.xlane.xlu0 %867
  %v869 = vadd.f32 %v760, %v762
  %v870 = vadd.f32 %v869, %v849
  %v871 = vadd.f32 %v870, %v851
  %872 = vadd.xlane.f32.xlu0 %v871
  %v873 = vpop.xlane.xlu0 %872
  %v874 = vadd.f32 %v766, %v768
  %v875 = vadd.f32 %v874, %v855
  %v876 = vadd.f32 %v875, %v857
  %877 = vadd.xlane.f32.xlu0 %v876
  %v878 = vpop.xlane.xlu0 %877
  %v879 = vmul.f32 %v863, 0.001953125
  %v880 = vmul.f32 %v868, 0.001953125
  %v881 = vmul.f32 %v873, 0.001953125
  %v882 = vmul.f32 %v878, 0.001953125
  %v883 = vmul.f32 %v748, %v748
  %v884 = vmul.f32 %v750, %v750
  %v885 = vmul.f32 %v837, %v837
  %v886 = vmul.f32 %v839, %v839
  %v887 = vmul.f32 %v754, %v754
  %v888 = vmul.f32 %v756, %v756
  %v889 = vmul.f32 %v843, %v843
  %v890 = vmul.f32 %v845, %v845
  %v891 = vmul.f32 %v760, %v760
  %v892 = vmul.f32 %v762, %v762
  %v893 = vmul.f32 %v849, %v849
  %v894 = vmul.f32 %v851, %v851
  %v895 = vmul.f32 %v766, %v766
  %v896 = vmul.f32 %v768, %v768
  %v897 = vmul.f32 %v855, %v855
  %v898 = vmul.f32 %v857, %v857
  %v899 = vadd.f32 %v883, %v884
  %v900 = vadd.f32 %v899, %v885
  %v901 = vadd.f32 %v900, %v886
  %902 = vadd.xlane.f32.xlu0 %v901
  %v903 = vpop.xlane.xlu0 %902
  %v904 = vadd.f32 %v887, %v888
  %v905 = vadd.f32 %v904, %v889
  %v906 = vadd.f32 %v905, %v890
  %907 = vadd.xlane.f32.xlu0 %v906
  %v908 = vpop.xlane.xlu0 %907
  %v909 = vadd.f32 %v891, %v892
  %v910 = vadd.f32 %v909, %v893
  %v911 = vadd.f32 %v910, %v894
  %912 = vadd.xlane.f32.xlu0 %v911
  %v913 = vpop.xlane.xlu0 %912
  %v914 = vadd.f32 %v895, %v896
  %v915 = vadd.f32 %v914, %v897
  %v916 = vadd.f32 %v915, %v898
  %917 = vadd.xlane.f32.xlu0 %v916
  %v918 = vpop.xlane.xlu0 %917
  %v919 = vmul.f32 %v903, 0.001953125
  %v920 = vmul.f32 %v908, 0.001953125
  %v921 = vmul.f32 %v913, 0.001953125
  %v922 = vmul.f32 %v918, 0.001953125
  %v923 = vmul.f32 %v879, %v879
  %v924 = vmul.f32 %v880, %v880
  %v925 = vmul.f32 %v881, %v881
  %v926 = vmul.f32 %v882, %v882
  %v927 = vsub.f32 %v919, %v923
  %v928 = vsub.f32 %v920, %v924
  %v929 = vsub.f32 %v921, %v925
  %v930 = vsub.f32 %v922, %v926
  %v931 = vld [vmem:[%s4] sm:$0xff]
  %v932 = vld [vmem:[%s4 + $0x8] sm:$0xff]
  %v933 = vld [vmem:[%s4 + $0x10] sm:$0xff]
  %v934 = vld [vmem:[%s4 + $0x18] sm:$0xff]
  %v935 = vadd.f32 %v927, 1e-05
  %v936 = vadd.f32 %v928, 1e-05
  %v937 = vadd.f32 %v929, 1e-05
  %v938 = vadd.f32 %v930, 1e-05
  %v939 = vrsqrt.pop %v935
  %v940 = vrsqrt.pop %v936
  %v941 = vrsqrt.pop %v937
  %v942 = vrsqrt.pop %v938
  %v943 = vmul.f32 %v931, %v939
  %v944 = vmul.f32 %v932, %v940
  %v945 = vmul.f32 %v933, %v941
  %v946 = vmul.f32 %v934, %v942
  %v947 = vmul.f32 %v879, %v943
  %v948 = vmul.f32 %v880, %v944
  %v949 = vmul.f32 %v881, %v945
  %v950 = vmul.f32 %v882, %v946
  %955 = vrot.lane.b32.xlu0 %v947, 1
  %v956 = vpop.permute.xlu0 %955
  %957 = vrot.lane.b32.xlu0 %v948, 1
  %v958 = vpop.permute.xlu0 %957
  %959 = vrot.lane.b32.xlu0 %v949, 1
  %v960 = vpop.permute.xlu0 %959
  %961 = vrot.lane.b32.xlu0 %v950, 1
  %v962 = vpop.permute.xlu0 %961
  %v967 = vsub.f32 %v931, %v956
  %v968 = vsub.f32 %v932, %v958
  %v969 = vsub.f32 %v933, %v960
  %v970 = vsub.f32 %v934, %v962
  %972 = vset.pattern.permute.xlu0 0
  %973 = vperm.xlu0 %972, %v943
  %v974 = vpop.permute.xlu0 %973
  %977 = vset.pattern.permute.xlu0 0
  %978 = vperm.xlu0 %977, %v944
  %v979 = vpop.permute.xlu0 %978
  %982 = vset.pattern.permute.xlu0 0
  %983 = vperm.xlu0 %982, %v945
  %v984 = vpop.permute.xlu0 %983
  %987 = vset.pattern.permute.xlu0 0
  %988 = vperm.xlu0 %987, %v946
  %v989 = vpop.permute.xlu0 %988
  %v991 = vmul.f32 %v748, %v974
  %v992 = vmul.f32 %v750, %v974
  %v993 = vmul.f32 %v837, %v974
  %v994 = vmul.f32 %v839, %v974
  %v995 = vmul.f32 %v754, %v979
  %v996 = vmul.f32 %v756, %v979
  %v997 = vmul.f32 %v843, %v979
  %v998 = vmul.f32 %v845, %v979
  %v999 = vmul.f32 %v760, %v984
  %v1000 = vmul.f32 %v762, %v984
  %v1001 = vmul.f32 %v849, %v984
  %v1002 = vmul.f32 %v851, %v984
  %v1003 = vmul.f32 %v766, %v989
  %v1004 = vmul.f32 %v768, %v989
  %v1005 = vmul.f32 %v855, %v989
  %v1006 = vmul.f32 %v857, %v989
  %1008 = vset.pattern.permute.xlu0 1
  %1009 = vperm.xlu0 %1008, %v967
  %v1010 = vpop.permute.xlu0 %1009
  %1013 = vset.pattern.permute.xlu0 1
  %1014 = vperm.xlu0 %1013, %v968
  %v1015 = vpop.permute.xlu0 %1014
  %1018 = vset.pattern.permute.xlu0 1
  %1019 = vperm.xlu0 %1018, %v969
  %v1020 = vpop.permute.xlu0 %1019
  %1023 = vset.pattern.permute.xlu0 1
  %1024 = vperm.xlu0 %1023, %v970
  %v1025 = vpop.permute.xlu0 %1024
  %v1027 = vadd.f32 %v991, %v1010
  %v1028 = vadd.f32 %v992, %v1010
  %v1029 = vadd.f32 %v993, %v1010
  %v1030 = vadd.f32 %v994, %v1010
  %v1031 = vadd.f32 %v995, %v1015
  %v1032 = vadd.f32 %v996, %v1015
  %v1033 = vadd.f32 %v997, %v1015
  %v1034 = vadd.f32 %v998, %v1015
  %v1035 = vadd.f32 %v999, %v1020
  %v1036 = vadd.f32 %v1000, %v1020
  %v1037 = vadd.f32 %v1001, %v1020
  %v1038 = vadd.f32 %v1002, %v1020
  %v1039 = vadd.f32 %v1003, %v1025
  %v1040 = vadd.f32 %v1004, %v1025
  %v1041 = vadd.f32 %v1005, %v1025
  %v1042 = vadd.f32 %v1006, %v1025
  %v1043 = vmax.f32 %v1027, 0.0
  %v1044 = vmax.f32 %v1028, 0.0
  %v1045 = vmax.f32 %v1029, 0.0
  %v1046 = vmax.f32 %v1030, 0.0
  %v1047 = vmax.f32 %v1031, 0.0
  %v1048 = vmax.f32 %v1032, 0.0
  %v1049 = vmax.f32 %v1033, 0.0
  %v1050 = vmax.f32 %v1034, 0.0
  %v1051 = vmax.f32 %v1035, 0.0
  %v1052 = vmax.f32 %v1036, 0.0
  %v1053 = vmax.f32 %v1037, 0.0
  %v1054 = vmax.f32 %v1038, 0.0
  %v1055 = vmax.f32 %v1039, 0.0
  %v1056 = vmax.f32 %v1040, 0.0
  %v1057 = vmax.f32 %v1041, 0.0
  %v1058 = vmax.f32 %v1042, 0.0
  %v1059 = vld [vmem:[%s5] sm:$0xff]
  %vm1060 = vcmask 261120
  %v1062 = vsel %vm1060, %v1059, 0
  %1064 = vmatprep.subr.mxu0 0.0
  %1065 = vmatpush1.msra.mxu0 0.0
  %1066 = vmatprep.subr.mxu0 0.0
  %1067 = vmatpush1.msra.mxu0 0.0
  %1068 = vmatprep.subr.mxu0 0.0
  %1069 = vmatpush1.msra.mxu0 0.0
  %1070 = vmatprep.subr.mxu0 0.0
  %1071 = vmatpush1.msra.mxu0 0.0
  %1072 = vmatprep.subr.mxu0 0.0
  %1073 = vmatpush1.msra.mxu0 0.0
  %1074 = vmatprep.subr.mxu0 0.0
  %1075 = vmatpush1.msra.mxu0 0.0
  %1076 = vmatprep.subr.mxu0 0.0
  %1077 = vmatpush1.msra.mxu0 0.0
  %1078 = vmatprep.subr.mxu0 0.0
  %1079 = vmatpush1.msra.mxu0 0.0
  %1080 = vmatprep.subr.mxu0 0.0
  %1081 = vmatpush1.msra.mxu0 0.0
  %1082 = vmatprep.subr.mxu0 0.0
  %1083 = vmatpush1.msra.mxu0 0.0
  %1084 = vmatprep.subr.mxu0 0.0
  %1085 = vmatpush1.msra.mxu0 0.0
  %1086 = vmatprep.subr.mxu0 0.0
  %1087 = vmatpush1.msra.mxu0 0.0
  %1088 = vmatprep.subr.mxu0 %v1056
  %1089 = vmatpush1.msra.mxu0 %v1055
  %1090 = vmatprep.subr.mxu0 %v1052
  %1091 = vmatpush1.msra.mxu0 %v1051
  %1092 = vmatprep.subr.mxu0 %v1048
  %1093 = vmatpush1.msra.mxu0 %v1047
  %1094 = vmatprep.subr.mxu0 %v1044
  %1095 = vmatpush1.msra.mxu0 %v1043
  %1096 = vmatprep.subr.mxu0 0.0
  %1097 = vmatpush2.msra.mxu0 0.0
  %1098 = vmatprep.subr.mxu0 0.0
  %1099 = vmatpush2.msra.mxu0 0.0
  %1100 = vmatprep.subr.mxu0 0.0
  %1101 = vmatpush2.msra.mxu0 0.0
  %1102 = vmatprep.subr.mxu0 0.0
  %1103 = vmatpush2.msra.mxu0 0.0
  %1104 = vmatprep.subr.mxu0 0.0
  %1105 = vmatpush2.msra.mxu0 0.0
  %1106 = vmatprep.subr.mxu0 0.0
  %1107 = vmatpush2.msra.mxu0 0.0
  %1108 = vmatprep.subr.mxu0 0.0
  %1109 = vmatpush2.msra.mxu0 0.0
  %1110 = vmatprep.subr.mxu0 0.0
  %1111 = vmatpush2.msra.mxu0 0.0
  %1112 = vmatprep.subr.mxu0 0.0
  %1113 = vmatpush2.msra.mxu0 0.0
  %1114 = vmatprep.subr.mxu0 0.0
  %1115 = vmatpush2.msra.mxu0 0.0
  %1116 = vmatprep.subr.mxu0 0.0
  %1117 = vmatpush2.msra.mxu0 0.0
  %1118 = vmatprep.subr.mxu0 0.0
  %1119 = vmatpush2.msra.mxu0 0.0
  %1120 = vmatprep.subr.mxu0 0.0
  %1121 = vmatpush2.msra.mxu0 0.0
  %1122 = vmatprep.subr.mxu0 0.0
  %1123 = vmatpush2.msra.mxu0 0.0
  %1124 = vmatprep.subr.mxu0 0.0
  %1125 = vmatpush2.msra.mxu0 0.0
  %1126 = vmatprep.subr.mxu0 0.0
  %1127 = vmatpush2.msra.mxu0 0.0
  %1128 = vmatprep.mubr.f32.mxu0 0.0
  %1129 = vmatmul.mubr.f32.gmra.mxu0 %v1062
  %v1130 = vpop.f32.mrf.mxu0
  %v1131 = vadd.f32 0.0, %v1130
  %v1132 = vpop.f32.mrf.mxu0
  %v1133 = vadd.f32 0.0, %v1132
  %1134 = vdwg.mxu0
  %1135 = vmatprep.subr.mxu0 0.0
  %1136 = vmatpush1.msra.mxu0 0.0
  %1137 = vmatprep.subr.mxu0 0.0
  %1138 = vmatpush1.msra.mxu0 0.0
  %1139 = vmatprep.subr.mxu0 0.0
  %1140 = vmatpush1.msra.mxu0 0.0
  %1141 = vmatprep.subr.mxu0 0.0
  %1142 = vmatpush1.msra.mxu0 0.0
  %1143 = vmatprep.subr.mxu0 0.0
  %1144 = vmatpush1.msra.mxu0 0.0
  %1145 = vmatprep.subr.mxu0 0.0
  %1146 = vmatpush1.msra.mxu0 0.0
  %1147 = vmatprep.subr.mxu0 0.0
  %1148 = vmatpush1.msra.mxu0 0.0
  %1149 = vmatprep.subr.mxu0 0.0
  %1150 = vmatpush1.msra.mxu0 0.0
  %1151 = vmatprep.subr.mxu0 0.0
  %1152 = vmatpush1.msra.mxu0 0.0
  %1153 = vmatprep.subr.mxu0 0.0
  %1154 = vmatpush1.msra.mxu0 0.0
  %1155 = vmatprep.subr.mxu0 0.0
  %1156 = vmatpush1.msra.mxu0 0.0
  %1157 = vmatprep.subr.mxu0 0.0
  %1158 = vmatpush1.msra.mxu0 0.0
  %1159 = vmatprep.subr.mxu0 %v1058
  %1160 = vmatpush1.msra.mxu0 %v1057
  %1161 = vmatprep.subr.mxu0 %v1054
  %1162 = vmatpush1.msra.mxu0 %v1053
  %1163 = vmatprep.subr.mxu0 %v1050
  %1164 = vmatpush1.msra.mxu0 %v1049
  %1165 = vmatprep.subr.mxu0 %v1046
  %1166 = vmatpush1.msra.mxu0 %v1045
  %1167 = vmatprep.subr.mxu0 0.0
  %1168 = vmatpush2.msra.mxu0 0.0
  %1169 = vmatprep.subr.mxu0 0.0
  %1170 = vmatpush2.msra.mxu0 0.0
  %1171 = vmatprep.subr.mxu0 0.0
  %1172 = vmatpush2.msra.mxu0 0.0
  %1173 = vmatprep.subr.mxu0 0.0
  %1174 = vmatpush2.msra.mxu0 0.0
  %1175 = vmatprep.subr.mxu0 0.0
  %1176 = vmatpush2.msra.mxu0 0.0
  %1177 = vmatprep.subr.mxu0 0.0
  %1178 = vmatpush2.msra.mxu0 0.0
  %1179 = vmatprep.subr.mxu0 0.0
  %1180 = vmatpush2.msra.mxu0 0.0
  %1181 = vmatprep.subr.mxu0 0.0
  %1182 = vmatpush2.msra.mxu0 0.0
  %1183 = vmatprep.subr.mxu0 0.0
  %1184 = vmatpush2.msra.mxu0 0.0
  %1185 = vmatprep.subr.mxu0 0.0
  %1186 = vmatpush2.msra.mxu0 0.0
  %1187 = vmatprep.subr.mxu0 0.0
  %1188 = vmatpush2.msra.mxu0 0.0
  %1189 = vmatprep.subr.mxu0 0.0
  %1190 = vmatpush2.msra.mxu0 0.0
  %1191 = vmatprep.subr.mxu0 0.0
  %1192 = vmatpush2.msra.mxu0 0.0
  %1193 = vmatprep.subr.mxu0 0.0
  %1194 = vmatpush2.msra.mxu0 0.0
  %1195 = vmatprep.subr.mxu0 0.0
  %1196 = vmatpush2.msra.mxu0 0.0
  %1197 = vmatprep.subr.mxu0 0.0
  %1198 = vmatpush2.msra.mxu0 0.0
  %1199 = vmatprep.mubr.f32.mxu0 0.0
  %1200 = vmatmul.mubr.f32.gmra.mxu0 %v1062
  %v1201 = vpop.f32.mrf.mxu0
  %v1202 = vadd.f32 0.0, %v1201
  %v1203 = vpop.f32.mrf.mxu0
  %v1204 = vadd.f32 0.0, %v1203
  %1205 = vdwg.mxu0
  %v1206 = vld [vmem:[%s4] sm:$0x1]
  %1208 = vset.pattern.permute.xlu0 2
  %1209 = vperm.xlu0 %1208, %v1206
  %v1210 = vpop.permute.xlu0 %1209
  %v1212 = vadd.f32 %v1131, %v1210
  %v1213 = vadd.f32 %v1133, %v1210
  %v1214 = vadd.f32 %v1202, %v1210
  %v1215 = vadd.f32 %v1204, %v1210
  %v1216 = vxor.u32 %v1212, 2147483648
  %v1217 = vxor.u32 %v1213, 2147483648
  %v1218 = vxor.u32 %v1214, 2147483648
  %v1219 = vxor.u32 %v1215, 2147483648
  %v1220 = vmul.f32 %v1216, 1.442695
  %v1221 = vpow.pop %v1220
  %v1222 = vmul.f32 %v1217, 1.442695
  %v1223 = vpow.pop %v1222
  %v1224 = vmul.f32 %v1218, 1.442695
  %v1225 = vpow.pop %v1224
  %v1226 = vmul.f32 %v1219, 1.442695
  %v1227 = vpow.pop %v1226
  %v1228 = vadd.f32 %v1221, 1.0
  %v1229 = vadd.f32 %v1223, 1.0
  %v1230 = vadd.f32 %v1225, 1.0
  %v1231 = vadd.f32 %v1227, 1.0
  %v1232 = vrcp.pop %v1228
  %v1233 = vmul.f32 1.0, %v1232
  %v1234 = vrcp.pop %v1229
  %v1235 = vmul.f32 1.0, %v1234
  %v1236 = vrcp.pop %v1230
  %v1237 = vmul.f32 1.0, %v1236
  %v1238 = vrcp.pop %v1231
  %v1239 = vmul.f32 1.0, %v1238
  %v1242 = vrot.slane %v1233, 7
  %v1243 = vrot.slane %v1235, 7
  %v1246 = vrot.slane %v1233, 6
  %v1247 = vrot.slane %v1235, 6
  %v1250 = vrot.slane %v1233, 5
  %v1251 = vrot.slane %v1235, 5
  %v1256 = vrot.slane %v1237, 4
  %v1257 = vrot.slane %v1239, 4
  %v1260 = vrot.slane %v1237, 3
  %v1261 = vrot.slane %v1239, 3
  %v1264 = vrot.slane %v1237, 2
  %v1265 = vrot.slane %v1239, 2
  %v1268 = vrot.slane %v1237, 1
  %v1269 = vrot.slane %v1239, 1
  %vm1272 = vcmask 1040384
  %v1273 = vsel %vm1272, %v1233, %v1242
  %v1274 = vsel %vm1272, %v1235, %v1243
  %vm1275 = vcmask 1041408
  %v1276 = vsel %vm1275, %v1273, %v1246
  %v1277 = vsel %vm1275, %v1274, %v1247
  %vm1278 = vcmask 1042432
  %v1279 = vsel %vm1278, %v1276, %v1250
  %v1280 = vsel %vm1278, %v1277, %v1251
  %v1281 = vsel %vm46, %v1279, %v1256
  %v1282 = vsel %vm46, %v1280, %v1257
  %v1283 = vsel %vm595, %v1281, %v1260
  %v1284 = vsel %vm595, %v1282, %v1261
  %vm1285 = vcmask 1045504
  %v1286 = vsel %vm1285, %v1283, %v1264
  %v1287 = vsel %vm1285, %v1284, %v1265
  %vm1288 = vcmask 1046528
  %v1289 = vsel %vm1288, %v1286, %v1268
  %v1290 = vsel %vm1288, %v1287, %v1269
  %v1291 = vld [vmem:[%s1] sm:$0xff]
  %v1292 = vld [vmem:[%s1 + $0x8] sm:$0xff]
  %v1293 = vmul.f32 %v1289, %v1291
  %v1294 = vmul.f32 %v1290, %v1292
  %1295 = vst [vmem:[%s6] sm:$0xff] %v1293
  %1296 = vst [vmem:[%s6 + $0x8] sm:$0xff] %v1294
  // Predicated region
  $region26: #{timestep_aware_attention.1} parent=0 // pred_check
    _
  $region27: #{timestep_aware_attention.1} parent=0 // pred_check_branch
    %1298 = sbr.rel (0) target = $region29
  $region28: #{timestep_aware_attention.1} parent=0 // pred_region
    _
  $region29: #{timestep_aware_attention.1} parent=0 // pred_fallthru
    _
  // Predicated region
  $region30: #{timestep_aware_attention.1} parent=0 // pred_check
    _
  $region31: #{timestep_aware_attention.1} parent=0 // pred_check_branch
    %1300 = sbr.rel (0) target = $region33
  $region32: #{timestep_aware_attention.1} parent=0 // pred_region
    _
  $region33: #{timestep_aware_attention.1} parent=0 // pred_fallthru
    _

</llo_original>
